<compile_context>
chip_gen: v5e
topology: v5e:2x2
jax: 0.10.0
libtpu: 0.0.40
codegen_flags: <defaults>
</compile_context>

<pallas_src>
import jax
import jax.numpy as jnp
import numpy as np
from jax.experimental import pallas as pl
from jax.experimental.pallas import tpu as pltpu

LN_EPS = 1e-12


def _round_up(x, m):
    return ((x + m - 1) // m) * m


def bert_embeddings_kernel(
    ids_ref,      # SMEM (B*S_pad,) int32   -- scalar-prefetched token ids (flattened)
    tts_ref,      # VMEM (T, 1)    int32    -- token-type ids for this block
    word_hbm,     # ANY/HBM (V, H) f32      -- word embedding table (manual row gather)
    pos_ref,      # VMEM (T, H)    f32      -- position rows for this seq block
    type_ref,     # VMEM (TV, H)   f32      -- full token-type table (resident)
    gamma_ref,    # VMEM (1, H)    f32
    beta_ref,     # VMEM (1, H)    f32
    out_ref,      # VMEM (T, H)    f32
    wbuf,         # VMEM scratch (2*T, H) f32 -- double-buffered gathered word rows
    sem,          # DMA semaphores (2*T,)
):
    T, H = out_ref.shape
    TV = type_ref.shape[0]
    ib = pl.program_id(0)
    js = pl.program_id(1)
    njs = pl.num_programs(1)
    slot = js % 2

    def start_gather(js_blk, slot_idx):
        base = (ib * njs + js_blk) * T          # first flattened token of that block
        off = slot_idx * T
        for t in range(T):                      # T concurrent row DMAs, latency amortized
            row = ids_ref[base + t]
            pltpu.make_async_copy(
                word_hbm.at[pl.ds(row, 1), :],
                wbuf.at[pl.ds(off + t, 1), :],
                sem.at[off + t],
            ).start()

    # Prime the per-row pipeline (runs on whichever core owns this `ib`).
    @pl.when(js == 0)
    def _():
        start_gather(0, 0)

    # Kick off the gather for the NEXT seq block into the other buffer half so
    # those HBM row fetches overlap this block's wait + LayerNorm.
    @pl.when(js + 1 < njs)
    def _():
        start_gather(js + 1, 1 - slot)

    # Wait for this block's word-embedding rows.
    off = slot * T
    for t in range(T):
        pltpu.make_async_copy(
            word_hbm.at[pl.ds(0, 1), :],        # dummy src, only sizes/sem matter
            wbuf.at[pl.ds(off + t, 1), :],
            sem.at[off + t],
        ).wait()

    x_w = wbuf[pl.ds(pl.multiple_of(slot * T, T), T), :]     # (T, H) gathered word rows
    x_p = pos_ref[...]                                       # (T, H) position rows (exact slice)

    # Token-type lookup: exact 0/1-select sum over the tiny resident table (VPU).
    tt = tts_ref[...]                                        # (T, 1) int32
    type_tbl = type_ref[...]                                 # (TV, H)
    x_t = jnp.zeros((T, H), jnp.float32)
    for v in range(TV):
        x_t = x_t + (tt == v).astype(jnp.float32) * type_tbl[v:v + 1, :]

    x = x_w + x_p + x_t                                      # (T, H) f32

    # BertLayerNorm: biased variance, eps inside rsqrt; single-pass moments.
    mu = jnp.mean(x, axis=-1, keepdims=True)
    m2 = jnp.mean(x * x, axis=-1, keepdims=True)
    var = m2 - mu * mu
    y = (x - mu) * jax.lax.rsqrt(var + LN_EPS)
    out_ref[...] = (gamma_ref[...] * y + beta_ref[...]).astype(out_ref.dtype)
    # TODO(synk): training-mode dropout (hidden_dropout_prob) is identity in eval; omitted.


def bert_embeddings(input_ids, token_type_ids,
                    word_emb, pos_emb, type_emb, gamma, beta,
                    *, block_tokens=128):
    B, S = input_ids.shape
    V, H = word_emb.shape
    P = pos_emb.shape[0]
    TV = type_emb.shape[0]

    # Tokens-per-step tile: multiple of 8 sublanes, capped by the padded seq length.
    T = min(_round_up(block_tokens, 8), _round_up(S, 8))
    S_pad = _round_up(S, T)
    njs = S_pad // T
    pad_s = S_pad - S

    ids_pad = jnp.pad(input_ids.astype(jnp.int32), ((0, 0), (0, pad_s)))
    tts_pad = jnp.pad(token_type_ids.astype(jnp.int32), ((0, 0), (0, pad_s)))
    ids_flat = ids_pad.reshape(B * S_pad)            # scalar-prefetched into SMEM
    tts_3d = tts_pad.reshape(B, S_pad, 1)

    # Ensure the position table covers padded positions (padded outputs are discarded).
    pos_tbl = pos_emb.astype(jnp.float32)
    if P < S_pad:
        pos_tbl = jnp.pad(pos_tbl, ((0, S_pad - P), (0, 0)))

    gamma2d = gamma.reshape(1, H).astype(jnp.float32)
    beta2d = beta.reshape(1, H).astype(jnp.float32)

    grid_spec = pltpu.PrefetchScalarGridSpec(
        num_scalar_prefetch=1,
        grid=(B, njs),
        in_specs=[
            pl.BlockSpec((None, T, 1), lambda ib, js, ids_s: (ib, js, 0)),   # token-type ids
            pl.BlockSpec(memory_space=pl.ANY),                               # word table (HBM)
            pl.BlockSpec((T, H), lambda ib, js, ids_s: (js, 0)),             # position rows
            pl.BlockSpec((TV, H), lambda ib, js, ids_s: (0, 0)),             # type table (resident)
            pl.BlockSpec((1, H), lambda ib, js, ids_s: (0, 0)),              # gamma
            pl.BlockSpec((1, H), lambda ib, js, ids_s: (0, 0)),              # beta
        ],
        out_specs=pl.BlockSpec((None, T, H), lambda ib, js, ids_s: (ib, js, 0)),
        scratch_shapes=[
            pltpu.VMEM((2 * T, H), jnp.float32),       # double-buffered word rows
            pltpu.SemaphoreType.DMA((2 * T,)),
        ],
    )

    out = pl.pallas_call(
        bert_embeddings_kernel,
        out_shape=jax.ShapeDtypeStruct((B, S_pad, H), jnp.float32),
        grid_spec=grid_spec,
        compiler_params=pltpu.CompilerParams(
            # batch axis is independent -> "parallel" (v7x 2-TC sharding);
            # seq-block axis carries the double-buffered gather -> "arbitrary".
            dimension_semantics=("parallel", "arbitrary"),
        ),
    )(ids_flat, tts_3d, word_emb.astype(jnp.float32), pos_tbl,
      type_emb.astype(jnp.float32), gamma2d, beta2d)

    return out[:, :S, :]


def reference(input_ids, token_type_ids, word_emb, pos_emb, type_emb, gamma, beta):
    S = input_ids.shape[1]
    we = word_emb[input_ids]
    te = type_emb[token_type_ids]
    pe = pos_emb[jnp.arange(S)][None, :, :]
    x = we + pe + te
    u = x.mean(-1, keepdims=True)
    s = ((x - u) ** 2).mean(-1, keepdims=True)
    y = (x - u) / jnp.sqrt(s + LN_EPS)
    return gamma * y + beta


if __name__ == "__main__":
    vocab_size = 100
    hidden_size = 32
    max_position_embeddings = 16
    type_vocab_size = 2

    key = jax.random.PRNGKey(0)
    k_w, k_p, k_t, k_i, k_tt = jax.random.split(key, 5)

    word_emb = 0.02 * jax.random.normal(k_w, (vocab_size, hidden_size), jnp.float32)
    word_emb = word_emb.at[0].set(0.0)   # nn.Embedding(padding_idx=0) zeroes row 0
    pos_emb = 0.02 * jax.random.normal(k_p, (max_position_embeddings, hidden_size), jnp.float32)
    type_emb = 0.02 * jax.random.normal(k_t, (type_vocab_size, hidden_size), jnp.float32)
    gamma = jnp.ones((hidden_size,), jnp.float32)
    beta = jnp.zeros((hidden_size,), jnp.float32)

    # Case 1: the exact inputs from the PyTorch spec (seq=5 -> one 8-token block per row).
    input_ids = jnp.array([[31, 51, 12, 23, 99],
                           [15, 5, 1, 0, 0]], dtype=jnp.int32)
    token_type_ids = jnp.array([[0, 0, 1, 1, 1],
                                [0, 1, 1, 1, 1]], dtype=jnp.int32)
    out = jax.block_until_ready(
        bert_embeddings(input_ids, token_type_ids,
                        word_emb, pos_emb, type_emb, gamma, beta, block_tokens=8))
    ref = reference(input_ids, token_type_ids, word_emb, pos_emb, type_emb, gamma, beta)
    np.testing.assert_allclose(np.asarray(out), np.asarray(ref), atol=1e-5, rtol=1e-5)

    # Case 2: longer sequence -> 2 seq blocks per row, exercising the
    # double-buffered (prefetch next-block) word-row gather path.
    input_ids2 = jax.random.randint(k_i, (2, 13), 0, vocab_size, dtype=jnp.int32)
    token_type_ids2 = jax.random.randint(k_tt, (2, 13), 0, type_vocab_size, dtype=jnp.int32)
    out2 = jax.block_until_ready(
        bert_embeddings(input_ids2, token_type_ids2,
                        word_emb, pos_emb, type_emb, gamma, beta, block_tokens=8))
    ref2 = reference(input_ids2, token_type_ids2, word_emb, pos_emb, type_emb, gamma, beta)
    np.testing.assert_allclose(np.asarray(out2), np.asarray(ref2), atol=1e-5, rtol=1e-5)

    print("KERNEL_OK")
</pallas_src>

<mosaic_0001>
module attributes {stable_mosaic.version = 11 : i64} {
  func.func @bert_embeddings_kernel(%arg0: i32, %arg1: i32, %arg2: memref<16xi32, #tpu.memory_space<smem>>, %arg3: memref<1x8x1xi32, #tpu.memory_space<vmem>>, %arg4: memref<100x32xf32, #tpu.memory_space<any>>, %arg5: memref<8x32xf32, #tpu.memory_space<vmem>>, %arg6: memref<2x32xf32, #tpu.memory_space<vmem>>, %arg7: memref<1x32xf32, #tpu.memory_space<vmem>>, %arg8: memref<1x32xf32, #tpu.memory_space<vmem>>, %arg9: memref<1x8x32xf32, #tpu.memory_space<vmem>>, %arg10: memref<16x32xf32, #tpu.memory_space<vmem>>, %arg11: memref<16x!tpu.dma_semaphore, #tpu.memory_space<semaphore_mem>>) attributes {dimension_semantics = [#tpu.dimension_semantics<parallel>, #tpu.dimension_semantics<arbitrary>], iteration_bounds = array<i64: 2, 1>, scalar_prefetch = 1 : i64, scratch_operands = 2 : i64, tpu.core_type = #tpu.core_type<tc>, window_params = [{transform_indices = @transform_0, window_bounds = array<i64: 1, 8, 1>}, {}, {transform_indices = @transform_2, window_bounds = array<i64: 8, 32>}, {pipeline_mode = #tpu.pipeline_mode<synchronous>, transform_indices = @transform_3, window_bounds = array<i64: 2, 32>}, {pipeline_mode = #tpu.pipeline_mode<synchronous>, transform_indices = @transform_4, window_bounds = array<i64: 1, 32>}, {pipeline_mode = #tpu.pipeline_mode<synchronous>, transform_indices = @transform_5, window_bounds = array<i64: 1, 32>}, {transform_indices = @transform_6, window_bounds = array<i64: 1, 8, 32>}]} {
    %c2_i32 = arith.constant 2 : i32
    %c0_i32 = arith.constant 0 : i32
    %0 = arith.cmpi eq, %c2_i32, %c0_i32 : i32
    %c1_i32 = arith.constant 1 : i32
    %1 = arith.select %0, %c1_i32, %c2_i32 : i32
    %2 = arith.remsi %arg1, %1 : i32
    %c0_i32_0 = arith.constant 0 : i32
    %3 = arith.cmpi ne, %2, %c0_i32_0 : i32
    %c0_i32_1 = arith.constant 0 : i32
    %4 = arith.cmpi slt, %2, %c0_i32_1 : i32
    %c0_i32_2 = arith.constant 0 : i32
    %5 = arith.cmpi slt, %1, %c0_i32_2 : i32
    %6 = arith.xori %4, %5 : i1
    %7 = arith.andi %6, %3 : i1
    %8 = arith.addi %2, %1 : i32
    %9 = arith.select %7, %8, %2 : i32
    %c0_i32_3 = arith.constant 0 : i32
    %10 = arith.cmpi eq, %arg1, %c0_i32_3 : i32
    %11 = arith.extui %10 : i1 to i32
    %c0_i32_4 = arith.constant 0 : i32
    %12 = arith.cmpi ne, %11, %c0_i32_4 : i32
    scf.if %12 {
      %c1_i32_65 = arith.constant 1 : i32
      %122 = arith.muli %arg0, %c1_i32_65 : i32
      %c0_i32_66 = arith.constant 0 : i32
      %123 = arith.addi %122, %c0_i32_66 : i32
      %c8_i32_67 = arith.constant 8 : i32
      %124 = arith.muli %123, %c8_i32_67 : i32
      %c0_i32_68 = arith.constant 0 : i32
      %125 = arith.addi %124, %c0_i32_68 : i32
      %126 = arith.index_cast %125 : i32 to index
      %127 = memref.load %arg2[%126] : memref<16xi32, #tpu.memory_space<smem>>
      %c0_i32_69 = arith.constant 0 : i32
      %c0_i32_70 = arith.constant 0 : i32
      %128 = tpu.memref_slice %arg4[%127, %c0_i32_70] : memref<100x32xf32, #tpu.memory_space<any>> -> memref<1x32xf32, #tpu.memory_space<any>>
      %c0_i32_71 = arith.constant 0 : i32
      %c0_i32_72 = arith.constant 0 : i32
      %129 = tpu.memref_slice %arg10[%c0_i32_71, %c0_i32_72] : memref<16x32xf32, #tpu.memory_space<vmem>> -> memref<1x32xf32, #tpu.memory_space<vmem>>
      %130 = tpu.memref_slice %arg11[%c0_i32_69] : memref<16x!tpu.dma_semaphore, #tpu.memory_space<semaphore_mem>> -> memref<1x!tpu.dma_semaphore, #tpu.memory_space<semaphore_mem>>
      %131 = tpu.memref_squeeze %130 : memref<1x!tpu.dma_semaphore, #tpu.memory_space<semaphore_mem>> -> memref<!tpu.dma_semaphore, #tpu.memory_space<semaphore_mem>>
      tpu.enqueue_dma source(%128 : memref<1x32xf32, #tpu.memory_space<any>>) target(%129 : memref<1x32xf32, #tpu.memory_space<vmem>>) target_semaphore(%131 : memref<!tpu.dma_semaphore, #tpu.memory_space<semaphore_mem>>)
      %c1_i32_73 = arith.constant 1 : i32
      %132 = arith.addi %124, %c1_i32_73 : i32
      %133 = arith.index_cast %132 : i32 to index
      %134 = memref.load %arg2[%133] : memref<16xi32, #tpu.memory_space<smem>>
      %c1_i32_74 = arith.constant 1 : i32
      %c0_i32_75 = arith.constant 0 : i32
      %135 = tpu.memref_slice %arg4[%134, %c0_i32_75] : memref<100x32xf32, #tpu.memory_space<any>> -> memref<1x32xf32, #tpu.memory_space<any>>
      %c1_i32_76 = arith.constant 1 : i32
      %c0_i32_77 = arith.constant 0 : i32
      %136 = tpu.memref_slice %arg10[%c1_i32_76, %c0_i32_77] : memref<16x32xf32, #tpu.memory_space<vmem>> -> memref<1x32xf32, #tpu.memory_space<vmem>>
      %137 = tpu.memref_slice %arg11[%c1_i32_74] : memref<16x!tpu.dma_semaphore, #tpu.memory_space<semaphore_mem>> -> memref<1x!tpu.dma_semaphore, #tpu.memory_space<semaphore_mem>>
      %138 = tpu.memref_squeeze %137 : memref<1x!tpu.dma_semaphore, #tpu.memory_space<semaphore_mem>> -> memref<!tpu.dma_semaphore, #tpu.memory_space<semaphore_mem>>
      tpu.enqueue_dma source(%135 : memref<1x32xf32, #tpu.memory_space<any>>) target(%136 : memref<1x32xf32, #tpu.memory_space<vmem>>) target_semaphore(%138 : memref<!tpu.dma_semaphore, #tpu.memory_space<semaphore_mem>>)
      %c2_i32_78 = arith.constant 2 : i32
      %139 = arith.addi %124, %c2_i32_78 : i32
      %140 = arith.index_cast %139 : i32 to index
      %141 = memref.load %arg2[%140] : memref<16xi32, #tpu.memory_space<smem>>
      %c2_i32_79 = arith.constant 2 : i32
      %c0_i32_80 = arith.constant 0 : i32
      %142 = tpu.memref_slice %arg4[%141, %c0_i32_80] : memref<100x32xf32, #tpu.memory_space<any>> -> memref<1x32xf32, #tpu.memory_space<any>>
      %c2_i32_81 = arith.constant 2 : i32
      %c0_i32_82 = arith.constant 0 : i32
      %143 = tpu.memref_slice %arg10[%c2_i32_81, %c0_i32_82] : memref<16x32xf32, #tpu.memory_space<vmem>> -> memref<1x32xf32, #tpu.memory_space<vmem>>
      %144 = tpu.memref_slice %arg11[%c2_i32_79] : memref<16x!tpu.dma_semaphore, #tpu.memory_space<semaphore_mem>> -> memref<1x!tpu.dma_semaphore, #tpu.memory_space<semaphore_mem>>
      %145 = tpu.memref_squeeze %144 : memref<1x!tpu.dma_semaphore, #tpu.memory_space<semaphore_mem>> -> memref<!tpu.dma_semaphore, #tpu.memory_space<semaphore_mem>>
      tpu.enqueue_dma source(%142 : memref<1x32xf32, #tpu.memory_space<any>>) target(%143 : memref<1x32xf32, #tpu.memory_space<vmem>>) target_semaphore(%145 : memref<!tpu.dma_semaphore, #tpu.memory_space<semaphore_mem>>)
      %c3_i32_83 = arith.constant 3 : i32
      %146 = arith.addi %124, %c3_i32_83 : i32
      %147 = arith.index_cast %146 : i32 to index
      %148 = memref.load %arg2[%147] : memref<16xi32, #tpu.memory_space<smem>>
      %c3_i32_84 = arith.constant 3 : i32
      %c0_i32_85 = arith.constant 0 : i32
      %149 = tpu.memref_slice %arg4[%148, %c0_i32_85] : memref<100x32xf32, #tpu.memory_space<any>> -> memref<1x32xf32, #tpu.memory_space<any>>
      %c3_i32_86 = arith.constant 3 : i32
      %c0_i32_87 = arith.constant 0 : i32
      %150 = tpu.memref_slice %arg10[%c3_i32_86, %c0_i32_87] : memref<16x32xf32, #tpu.memory_space<vmem>> -> memref<1x32xf32, #tpu.memory_space<vmem>>
      %151 = tpu.memref_slice %arg11[%c3_i32_84] : memref<16x!tpu.dma_semaphore, #tpu.memory_space<semaphore_mem>> -> memref<1x!tpu.dma_semaphore, #tpu.memory_space<semaphore_mem>>
      %152 = tpu.memref_squeeze %151 : memref<1x!tpu.dma_semaphore, #tpu.memory_space<semaphore_mem>> -> memref<!tpu.dma_semaphore, #tpu.memory_space<semaphore_mem>>
      tpu.enqueue_dma source(%149 : memref<1x32xf32, #tpu.memory_space<any>>) target(%150 : memref<1x32xf32, #tpu.memory_space<vmem>>) target_semaphore(%152 : memref<!tpu.dma_semaphore, #tpu.memory_space<semaphore_mem>>)
      %c4_i32_88 = arith.constant 4 : i32
      %153 = arith.addi %124, %c4_i32_88 : i32
      %154 = arith.index_cast %153 : i32 to index
      %155 = memref.load %arg2[%154] : memref<16xi32, #tpu.memory_space<smem>>
      %c4_i32_89 = arith.constant 4 : i32
      %c0_i32_90 = arith.constant 0 : i32
      %156 = tpu.memref_slice %arg4[%155, %c0_i32_90] : memref<100x32xf32, #tpu.memory_space<any>> -> memref<1x32xf32, #tpu.memory_space<any>>
      %c4_i32_91 = arith.constant 4 : i32
      %c0_i32_92 = arith.constant 0 : i32
      %157 = tpu.memref_slice %arg10[%c4_i32_91, %c0_i32_92] : memref<16x32xf32, #tpu.memory_space<vmem>> -> memref<1x32xf32, #tpu.memory_space<vmem>>
      %158 = tpu.memref_slice %arg11[%c4_i32_89] : memref<16x!tpu.dma_semaphore, #tpu.memory_space<semaphore_mem>> -> memref<1x!tpu.dma_semaphore, #tpu.memory_space<semaphore_mem>>
      %159 = tpu.memref_squeeze %158 : memref<1x!tpu.dma_semaphore, #tpu.memory_space<semaphore_mem>> -> memref<!tpu.dma_semaphore, #tpu.memory_space<semaphore_mem>>
      tpu.enqueue_dma source(%156 : memref<1x32xf32, #tpu.memory_space<any>>) target(%157 : memref<1x32xf32, #tpu.memory_space<vmem>>) target_semaphore(%159 : memref<!tpu.dma_semaphore, #tpu.memory_space<semaphore_mem>>)
      %c5_i32_93 = arith.constant 5 : i32
      %160 = arith.addi %124, %c5_i32_93 : i32
      %161 = arith.index_cast %160 : i32 to index
      %162 = memref.load %arg2[%161] : memref<16xi32, #tpu.memory_space<smem>>
      %c5_i32_94 = arith.constant 5 : i32
      %c0_i32_95 = arith.constant 0 : i32
      %163 = tpu.memref_slice %arg4[%162, %c0_i32_95] : memref<100x32xf32, #tpu.memory_space<any>> -> memref<1x32xf32, #tpu.memory_space<any>>
      %c5_i32_96 = arith.constant 5 : i32
      %c0_i32_97 = arith.constant 0 : i32
      %164 = tpu.memref_slice %arg10[%c5_i32_96, %c0_i32_97] : memref<16x32xf32, #tpu.memory_space<vmem>> -> memref<1x32xf32, #tpu.memory_space<vmem>>
      %165 = tpu.memref_slice %arg11[%c5_i32_94] : memref<16x!tpu.dma_semaphore, #tpu.memory_space<semaphore_mem>> -> memref<1x!tpu.dma_semaphore, #tpu.memory_space<semaphore_mem>>
      %166 = tpu.memref_squeeze %165 : memref<1x!tpu.dma_semaphore, #tpu.memory_space<semaphore_mem>> -> memref<!tpu.dma_semaphore, #tpu.memory_space<semaphore_mem>>
      tpu.enqueue_dma source(%163 : memref<1x32xf32, #tpu.memory_space<any>>) target(%164 : memref<1x32xf32, #tpu.memory_space<vmem>>) target_semaphore(%166 : memref<!tpu.dma_semaphore, #tpu.memory_space<semaphore_mem>>)
      %c6_i32_98 = arith.constant 6 : i32
      %167 = arith.addi %124, %c6_i32_98 : i32
      %168 = arith.index_cast %167 : i32 to index
      %169 = memref.load %arg2[%168] : memref<16xi32, #tpu.memory_space<smem>>
      %c6_i32_99 = arith.constant 6 : i32
      %c0_i32_100 = arith.constant 0 : i32
      %170 = tpu.memref_slice %arg4[%169, %c0_i32_100] : memref<100x32xf32, #tpu.memory_space<any>> -> memref<1x32xf32, #tpu.memory_space<any>>
      %c6_i32_101 = arith.constant 6 : i32
      %c0_i32_102 = arith.constant 0 : i32
      %171 = tpu.memref_slice %arg10[%c6_i32_101, %c0_i32_102] : memref<16x32xf32, #tpu.memory_space<vmem>> -> memref<1x32xf32, #tpu.memory_space<vmem>>
      %172 = tpu.memref_slice %arg11[%c6_i32_99] : memref<16x!tpu.dma_semaphore, #tpu.memory_space<semaphore_mem>> -> memref<1x!tpu.dma_semaphore, #tpu.memory_space<semaphore_mem>>
      %173 = tpu.memref_squeeze %172 : memref<1x!tpu.dma_semaphore, #tpu.memory_space<semaphore_mem>> -> memref<!tpu.dma_semaphore, #tpu.memory_space<semaphore_mem>>
      tpu.enqueue_dma source(%170 : memref<1x32xf32, #tpu.memory_space<any>>) target(%171 : memref<1x32xf32, #tpu.memory_space<vmem>>) target_semaphore(%173 : memref<!tpu.dma_semaphore, #tpu.memory_space<semaphore_mem>>)
      %c7_i32_103 = arith.constant 7 : i32
      %174 = arith.addi %124, %c7_i32_103 : i32
      %175 = arith.index_cast %174 : i32 to index
      %176 = memref.load %arg2[%175] : memref<16xi32, #tpu.memory_space<smem>>
      %c7_i32_104 = arith.constant 7 : i32
      %c0_i32_105 = arith.constant 0 : i32
      %177 = tpu.memref_slice %arg4[%176, %c0_i32_105] : memref<100x32xf32, #tpu.memory_space<any>> -> memref<1x32xf32, #tpu.memory_space<any>>
      %c7_i32_106 = arith.constant 7 : i32
      %c0_i32_107 = arith.constant 0 : i32
      %178 = tpu.memref_slice %arg10[%c7_i32_106, %c0_i32_107] : memref<16x32xf32, #tpu.memory_space<vmem>> -> memref<1x32xf32, #tpu.memory_space<vmem>>
      %179 = tpu.memref_slice %arg11[%c7_i32_104] : memref<16x!tpu.dma_semaphore, #tpu.memory_space<semaphore_mem>> -> memref<1x!tpu.dma_semaphore, #tpu.memory_space<semaphore_mem>>
      %180 = tpu.memref_squeeze %179 : memref<1x!tpu.dma_semaphore, #tpu.memory_space<semaphore_mem>> -> memref<!tpu.dma_semaphore, #tpu.memory_space<semaphore_mem>>
      tpu.enqueue_dma source(%177 : memref<1x32xf32, #tpu.memory_space<any>>) target(%178 : memref<1x32xf32, #tpu.memory_space<vmem>>) target_semaphore(%180 : memref<!tpu.dma_semaphore, #tpu.memory_space<semaphore_mem>>)
    } else {
    }
    %c1_i32_5 = arith.constant 1 : i32
    %13 = arith.addi %arg1, %c1_i32_5 : i32
    %c1_i32_6 = arith.constant 1 : i32
    %14 = arith.cmpi slt, %13, %c1_i32_6 : i32
    %15 = arith.extui %14 : i1 to i32
    %c0_i32_7 = arith.constant 0 : i32
    %16 = arith.cmpi ne, %15, %c0_i32_7 : i32
    scf.if %16 {
      %c1_i32_65 = arith.constant 1 : i32
      %122 = arith.addi %arg1, %c1_i32_65 : i32
      %c1_i32_66 = arith.constant 1 : i32
      %123 = arith.subi %c1_i32_66, %9 : i32
      %c1_i32_67 = arith.constant 1 : i32
      %124 = arith.muli %arg0, %c1_i32_67 : i32
      %125 = arith.addi %124, %122 : i32
      %c8_i32_68 = arith.constant 8 : i32
      %126 = arith.muli %125, %c8_i32_68 : i32
      %c8_i32_69 = arith.constant 8 : i32
      %127 = arith.muli %123, %c8_i32_69 : i32
      %c0_i32_70 = arith.constant 0 : i32
      %128 = arith.addi %126, %c0_i32_70 : i32
      %129 = arith.index_cast %128 : i32 to index
      %130 = memref.load %arg2[%129] : memref<16xi32, #tpu.memory_space<smem>>
      %c0_i32_71 = arith.constant 0 : i32
      %131 = arith.addi %127, %c0_i32_71 : i32
      %c0_i32_72 = arith.constant 0 : i32
      %132 = arith.addi %127, %c0_i32_72 : i32
      %c0_i32_73 = arith.constant 0 : i32
      %133 = tpu.memref_slice %arg4[%130, %c0_i32_73] : memref<100x32xf32, #tpu.memory_space<any>> -> memref<1x32xf32, #tpu.memory_space<any>>
      %c0_i32_74 = arith.constant 0 : i32
      %134 = tpu.memref_slice %arg10[%131, %c0_i32_74] : memref<16x32xf32, #tpu.memory_space<vmem>> -> memref<1x32xf32, #tpu.memory_space<vmem>>
      %135 = tpu.memref_slice %arg11[%132] : memref<16x!tpu.dma_semaphore, #tpu.memory_space<semaphore_mem>> -> memref<1x!tpu.dma_semaphore, #tpu.memory_space<semaphore_mem>>
      %136 = tpu.memref_squeeze %135 : memref<1x!tpu.dma_semaphore, #tpu.memory_space<semaphore_mem>> -> memref<!tpu.dma_semaphore, #tpu.memory_space<semaphore_mem>>
      tpu.enqueue_dma source(%133 : memref<1x32xf32, #tpu.memory_space<any>>) target(%134 : memref<1x32xf32, #tpu.memory_space<vmem>>) target_semaphore(%136 : memref<!tpu.dma_semaphore, #tpu.memory_space<semaphore_mem>>)
      %c1_i32_75 = arith.constant 1 : i32
      %137 = arith.addi %126, %c1_i32_75 : i32
      %138 = arith.index_cast %137 : i32 to index
      %139 = memref.load %arg2[%138] : memref<16xi32, #tpu.memory_space<smem>>
      %c1_i32_76 = arith.constant 1 : i32
      %140 = arith.addi %127, %c1_i32_76 : i32
      %c1_i32_77 = arith.constant 1 : i32
      %141 = arith.addi %127, %c1_i32_77 : i32
      %c0_i32_78 = arith.constant 0 : i32
      %142 = tpu.memref_slice %arg4[%139, %c0_i32_78] : memref<100x32xf32, #tpu.memory_space<any>> -> memref<1x32xf32, #tpu.memory_space<any>>
      %c0_i32_79 = arith.constant 0 : i32
      %143 = tpu.memref_slice %arg10[%140, %c0_i32_79] : memref<16x32xf32, #tpu.memory_space<vmem>> -> memref<1x32xf32, #tpu.memory_space<vmem>>
      %144 = tpu.memref_slice %arg11[%141] : memref<16x!tpu.dma_semaphore, #tpu.memory_space<semaphore_mem>> -> memref<1x!tpu.dma_semaphore, #tpu.memory_space<semaphore_mem>>
      %145 = tpu.memref_squeeze %144 : memref<1x!tpu.dma_semaphore, #tpu.memory_space<semaphore_mem>> -> memref<!tpu.dma_semaphore, #tpu.memory_space<semaphore_mem>>
      tpu.enqueue_dma source(%142 : memref<1x32xf32, #tpu.memory_space<any>>) target(%143 : memref<1x32xf32, #tpu.memory_space<vmem>>) target_semaphore(%145 : memref<!tpu.dma_semaphore, #tpu.memory_space<semaphore_mem>>)
      %c2_i32_80 = arith.constant 2 : i32
      %146 = arith.addi %126, %c2_i32_80 : i32
      %147 = arith.index_cast %146 : i32 to index
      %148 = memref.load %arg2[%147] : memref<16xi32, #tpu.memory_space<smem>>
      %c2_i32_81 = arith.constant 2 : i32
      %149 = arith.addi %127, %c2_i32_81 : i32
      %c2_i32_82 = arith.constant 2 : i32
      %150 = arith.addi %127, %c2_i32_82 : i32
      %c0_i32_83 = arith.constant 0 : i32
      %151 = tpu.memref_slice %arg4[%148, %c0_i32_83] : memref<100x32xf32, #tpu.memory_space<any>> -> memref<1x32xf32, #tpu.memory_space<any>>
      %c0_i32_84 = arith.constant 0 : i32
      %152 = tpu.memref_slice %arg10[%149, %c0_i32_84] : memref<16x32xf32, #tpu.memory_space<vmem>> -> memref<1x32xf32, #tpu.memory_space<vmem>>
      %153 = tpu.memref_slice %arg11[%150] : memref<16x!tpu.dma_semaphore, #tpu.memory_space<semaphore_mem>> -> memref<1x!tpu.dma_semaphore, #tpu.memory_space<semaphore_mem>>
      %154 = tpu.memref_squeeze %153 : memref<1x!tpu.dma_semaphore, #tpu.memory_space<semaphore_mem>> -> memref<!tpu.dma_semaphore, #tpu.memory_space<semaphore_mem>>
      tpu.enqueue_dma source(%151 : memref<1x32xf32, #tpu.memory_space<any>>) target(%152 : memref<1x32xf32, #tpu.memory_space<vmem>>) target_semaphore(%154 : memref<!tpu.dma_semaphore, #tpu.memory_space<semaphore_mem>>)
      %c3_i32_85 = arith.constant 3 : i32
      %155 = arith.addi %126, %c3_i32_85 : i32
      %156 = arith.index_cast %155 : i32 to index
      %157 = memref.load %arg2[%156] : memref<16xi32, #tpu.memory_space<smem>>
      %c3_i32_86 = arith.constant 3 : i32
      %158 = arith.addi %127, %c3_i32_86 : i32
      %c3_i32_87 = arith.constant 3 : i32
      %159 = arith.addi %127, %c3_i32_87 : i32
      %c0_i32_88 = arith.constant 0 : i32
      %160 = tpu.memref_slice %arg4[%157, %c0_i32_88] : memref<100x32xf32, #tpu.memory_space<any>> -> memref<1x32xf32, #tpu.memory_space<any>>
      %c0_i32_89 = arith.constant 0 : i32
      %161 = tpu.memref_slice %arg10[%158, %c0_i32_89] : memref<16x32xf32, #tpu.memory_space<vmem>> -> memref<1x32xf32, #tpu.memory_space<vmem>>
      %162 = tpu.memref_slice %arg11[%159] : memref<16x!tpu.dma_semaphore, #tpu.memory_space<semaphore_mem>> -> memref<1x!tpu.dma_semaphore, #tpu.memory_space<semaphore_mem>>
      %163 = tpu.memref_squeeze %162 : memref<1x!tpu.dma_semaphore, #tpu.memory_space<semaphore_mem>> -> memref<!tpu.dma_semaphore, #tpu.memory_space<semaphore_mem>>
      tpu.enqueue_dma source(%160 : memref<1x32xf32, #tpu.memory_space<any>>) target(%161 : memref<1x32xf32, #tpu.memory_space<vmem>>) target_semaphore(%163 : memref<!tpu.dma_semaphore, #tpu.memory_space<semaphore_mem>>)
      %c4_i32_90 = arith.constant 4 : i32
      %164 = arith.addi %126, %c4_i32_90 : i32
      %165 = arith.index_cast %164 : i32 to index
      %166 = memref.load %arg2[%165] : memref<16xi32, #tpu.memory_space<smem>>
      %c4_i32_91 = arith.constant 4 : i32
      %167 = arith.addi %127, %c4_i32_91 : i32
      %c4_i32_92 = arith.constant 4 : i32
      %168 = arith.addi %127, %c4_i32_92 : i32
      %c0_i32_93 = arith.constant 0 : i32
      %169 = tpu.memref_slice %arg4[%166, %c0_i32_93] : memref<100x32xf32, #tpu.memory_space<any>> -> memref<1x32xf32, #tpu.memory_space<any>>
      %c0_i32_94 = arith.constant 0 : i32
      %170 = tpu.memref_slice %arg10[%167, %c0_i32_94] : memref<16x32xf32, #tpu.memory_space<vmem>> -> memref<1x32xf32, #tpu.memory_space<vmem>>
      %171 = tpu.memref_slice %arg11[%168] : memref<16x!tpu.dma_semaphore, #tpu.memory_space<semaphore_mem>> -> memref<1x!tpu.dma_semaphore, #tpu.memory_space<semaphore_mem>>
      %172 = tpu.memref_squeeze %171 : memref<1x!tpu.dma_semaphore, #tpu.memory_space<semaphore_mem>> -> memref<!tpu.dma_semaphore, #tpu.memory_space<semaphore_mem>>
      tpu.enqueue_dma source(%169 : memref<1x32xf32, #tpu.memory_space<any>>) target(%170 : memref<1x32xf32, #tpu.memory_space<vmem>>) target_semaphore(%172 : memref<!tpu.dma_semaphore, #tpu.memory_space<semaphore_mem>>)
      %c5_i32_95 = arith.constant 5 : i32
      %173 = arith.addi %126, %c5_i32_95 : i32
      %174 = arith.index_cast %173 : i32 to index
      %175 = memref.load %arg2[%174] : memref<16xi32, #tpu.memory_space<smem>>
      %c5_i32_96 = arith.constant 5 : i32
      %176 = arith.addi %127, %c5_i32_96 : i32
      %c5_i32_97 = arith.constant 5 : i32
      %177 = arith.addi %127, %c5_i32_97 : i32
      %c0_i32_98 = arith.constant 0 : i32
      %178 = tpu.memref_slice %arg4[%175, %c0_i32_98] : memref<100x32xf32, #tpu.memory_space<any>> -> memref<1x32xf32, #tpu.memory_space<any>>
      %c0_i32_99 = arith.constant 0 : i32
      %179 = tpu.memref_slice %arg10[%176, %c0_i32_99] : memref<16x32xf32, #tpu.memory_space<vmem>> -> memref<1x32xf32, #tpu.memory_space<vmem>>
      %180 = tpu.memref_slice %arg11[%177] : memref<16x!tpu.dma_semaphore, #tpu.memory_space<semaphore_mem>> -> memref<1x!tpu.dma_semaphore, #tpu.memory_space<semaphore_mem>>
      %181 = tpu.memref_squeeze %180 : memref<1x!tpu.dma_semaphore, #tpu.memory_space<semaphore_mem>> -> memref<!tpu.dma_semaphore, #tpu.memory_space<semaphore_mem>>
      tpu.enqueue_dma source(%178 : memref<1x32xf32, #tpu.memory_space<any>>) target(%179 : memref<1x32xf32, #tpu.memory_space<vmem>>) target_semaphore(%181 : memref<!tpu.dma_semaphore, #tpu.memory_space<semaphore_mem>>)
      %c6_i32_100 = arith.constant 6 : i32
      %182 = arith.addi %126, %c6_i32_100 : i32
      %183 = arith.index_cast %182 : i32 to index
      %184 = memref.load %arg2[%183] : memref<16xi32, #tpu.memory_space<smem>>
      %c6_i32_101 = arith.constant 6 : i32
      %185 = arith.addi %127, %c6_i32_101 : i32
      %c6_i32_102 = arith.constant 6 : i32
      %186 = arith.addi %127, %c6_i32_102 : i32
      %c0_i32_103 = arith.constant 0 : i32
      %187 = tpu.memref_slice %arg4[%184, %c0_i32_103] : memref<100x32xf32, #tpu.memory_space<any>> -> memref<1x32xf32, #tpu.memory_space<any>>
      %c0_i32_104 = arith.constant 0 : i32
      %188 = tpu.memref_slice %arg10[%185, %c0_i32_104] : memref<16x32xf32, #tpu.memory_space<vmem>> -> memref<1x32xf32, #tpu.memory_space<vmem>>
      %189 = tpu.memref_slice %arg11[%186] : memref<16x!tpu.dma_semaphore, #tpu.memory_space<semaphore_mem>> -> memref<1x!tpu.dma_semaphore, #tpu.memory_space<semaphore_mem>>
      %190 = tpu.memref_squeeze %189 : memref<1x!tpu.dma_semaphore, #tpu.memory_space<semaphore_mem>> -> memref<!tpu.dma_semaphore, #tpu.memory_space<semaphore_mem>>
      tpu.enqueue_dma source(%187 : memref<1x32xf32, #tpu.memory_space<any>>) target(%188 : memref<1x32xf32, #tpu.memory_space<vmem>>) target_semaphore(%190 : memref<!tpu.dma_semaphore, #tpu.memory_space<semaphore_mem>>)
      %c7_i32_105 = arith.constant 7 : i32
      %191 = arith.addi %126, %c7_i32_105 : i32
      %192 = arith.index_cast %191 : i32 to index
      %193 = memref.load %arg2[%192] : memref<16xi32, #tpu.memory_space<smem>>
      %c7_i32_106 = arith.constant 7 : i32
      %194 = arith.addi %127, %c7_i32_106 : i32
      %c7_i32_107 = arith.constant 7 : i32
      %195 = arith.addi %127, %c7_i32_107 : i32
      %c0_i32_108 = arith.constant 0 : i32
      %196 = tpu.memref_slice %arg4[%193, %c0_i32_108] : memref<100x32xf32, #tpu.memory_space<any>> -> memref<1x32xf32, #tpu.memory_space<any>>
      %c0_i32_109 = arith.constant 0 : i32
      %197 = tpu.memref_slice %arg10[%194, %c0_i32_109] : memref<16x32xf32, #tpu.memory_space<vmem>> -> memref<1x32xf32, #tpu.memory_space<vmem>>
      %198 = tpu.memref_slice %arg11[%195] : memref<16x!tpu.dma_semaphore, #tpu.memory_space<semaphore_mem>> -> memref<1x!tpu.dma_semaphore, #tpu.memory_space<semaphore_mem>>
      %199 = tpu.memref_squeeze %198 : memref<1x!tpu.dma_semaphore, #tpu.memory_space<semaphore_mem>> -> memref<!tpu.dma_semaphore, #tpu.memory_space<semaphore_mem>>
      tpu.enqueue_dma source(%196 : memref<1x32xf32, #tpu.memory_space<any>>) target(%197 : memref<1x32xf32, #tpu.memory_space<vmem>>) target_semaphore(%199 : memref<!tpu.dma_semaphore, #tpu.memory_space<semaphore_mem>>)
    } else {
    }
    %c8_i32 = arith.constant 8 : i32
    %17 = arith.muli %9, %c8_i32 : i32
    %c0_i32_8 = arith.constant 0 : i32
    %18 = arith.addi %17, %c0_i32_8 : i32
    %c0_i32_9 = arith.constant 0 : i32
    %19 = arith.addi %17, %c0_i32_9 : i32
    %c0_i32_10 = arith.constant 0 : i32
    %c0_i32_11 = arith.constant 0 : i32
    %20 = tpu.memref_slice %arg4[%c0_i32_10, %c0_i32_11] : memref<100x32xf32, #tpu.memory_space<any>> -> memref<1x32xf32, #tpu.memory_space<any>>
    %c0_i32_12 = arith.constant 0 : i32
    %21 = tpu.memref_slice %arg10[%18, %c0_i32_12] : memref<16x32xf32, #tpu.memory_space<vmem>> -> memref<1x32xf32, #tpu.memory_space<vmem>>
    %22 = tpu.memref_slice %arg11[%19] : memref<16x!tpu.dma_semaphore, #tpu.memory_space<semaphore_mem>> -> memref<1x!tpu.dma_semaphore, #tpu.memory_space<semaphore_mem>>
    %23 = tpu.memref_squeeze %22 : memref<1x!tpu.dma_semaphore, #tpu.memory_space<semaphore_mem>> -> memref<!tpu.dma_semaphore, #tpu.memory_space<semaphore_mem>>
    tpu.wait_dma2 semaphore(%23 : memref<!tpu.dma_semaphore, #tpu.memory_space<semaphore_mem>>) src(%20 : memref<1x32xf32, #tpu.memory_space<any>>) dst(%21 : memref<1x32xf32, #tpu.memory_space<vmem>>)
    %c1_i32_13 = arith.constant 1 : i32
    %24 = arith.addi %17, %c1_i32_13 : i32
    %c1_i32_14 = arith.constant 1 : i32
    %25 = arith.addi %17, %c1_i32_14 : i32
    %c0_i32_15 = arith.constant 0 : i32
    %c0_i32_16 = arith.constant 0 : i32
    %26 = tpu.memref_slice %arg4[%c0_i32_15, %c0_i32_16] : memref<100x32xf32, #tpu.memory_space<any>> -> memref<1x32xf32, #tpu.memory_space<any>>
    %c0_i32_17 = arith.constant 0 : i32
    %27 = tpu.memref_slice %arg10[%24, %c0_i32_17] : memref<16x32xf32, #tpu.memory_space<vmem>> -> memref<1x32xf32, #tpu.memory_space<vmem>>
    %28 = tpu.memref_slice %arg11[%25] : memref<16x!tpu.dma_semaphore, #tpu.memory_space<semaphore_mem>> -> memref<1x!tpu.dma_semaphore, #tpu.memory_space<semaphore_mem>>
    %29 = tpu.memref_squeeze %28 : memref<1x!tpu.dma_semaphore, #tpu.memory_space<semaphore_mem>> -> memref<!tpu.dma_semaphore, #tpu.memory_space<semaphore_mem>>
    tpu.wait_dma2 semaphore(%29 : memref<!tpu.dma_semaphore, #tpu.memory_space<semaphore_mem>>) src(%26 : memref<1x32xf32, #tpu.memory_space<any>>) dst(%27 : memref<1x32xf32, #tpu.memory_space<vmem>>)
    %c2_i32_18 = arith.constant 2 : i32
    %30 = arith.addi %17, %c2_i32_18 : i32
    %c2_i32_19 = arith.constant 2 : i32
    %31 = arith.addi %17, %c2_i32_19 : i32
    %c0_i32_20 = arith.constant 0 : i32
    %c0_i32_21 = arith.constant 0 : i32
    %32 = tpu.memref_slice %arg4[%c0_i32_20, %c0_i32_21] : memref<100x32xf32, #tpu.memory_space<any>> -> memref<1x32xf32, #tpu.memory_space<any>>
    %c0_i32_22 = arith.constant 0 : i32
    %33 = tpu.memref_slice %arg10[%30, %c0_i32_22] : memref<16x32xf32, #tpu.memory_space<vmem>> -> memref<1x32xf32, #tpu.memory_space<vmem>>
    %34 = tpu.memref_slice %arg11[%31] : memref<16x!tpu.dma_semaphore, #tpu.memory_space<semaphore_mem>> -> memref<1x!tpu.dma_semaphore, #tpu.memory_space<semaphore_mem>>
    %35 = tpu.memref_squeeze %34 : memref<1x!tpu.dma_semaphore, #tpu.memory_space<semaphore_mem>> -> memref<!tpu.dma_semaphore, #tpu.memory_space<semaphore_mem>>
    tpu.wait_dma2 semaphore(%35 : memref<!tpu.dma_semaphore, #tpu.memory_space<semaphore_mem>>) src(%32 : memref<1x32xf32, #tpu.memory_space<any>>) dst(%33 : memref<1x32xf32, #tpu.memory_space<vmem>>)
    %c3_i32 = arith.constant 3 : i32
    %36 = arith.addi %17, %c3_i32 : i32
    %c3_i32_23 = arith.constant 3 : i32
    %37 = arith.addi %17, %c3_i32_23 : i32
    %c0_i32_24 = arith.constant 0 : i32
    %c0_i32_25 = arith.constant 0 : i32
    %38 = tpu.memref_slice %arg4[%c0_i32_24, %c0_i32_25] : memref<100x32xf32, #tpu.memory_space<any>> -> memref<1x32xf32, #tpu.memory_space<any>>
    %c0_i32_26 = arith.constant 0 : i32
    %39 = tpu.memref_slice %arg10[%36, %c0_i32_26] : memref<16x32xf32, #tpu.memory_space<vmem>> -> memref<1x32xf32, #tpu.memory_space<vmem>>
    %40 = tpu.memref_slice %arg11[%37] : memref<16x!tpu.dma_semaphore, #tpu.memory_space<semaphore_mem>> -> memref<1x!tpu.dma_semaphore, #tpu.memory_space<semaphore_mem>>
    %41 = tpu.memref_squeeze %40 : memref<1x!tpu.dma_semaphore, #tpu.memory_space<semaphore_mem>> -> memref<!tpu.dma_semaphore, #tpu.memory_space<semaphore_mem>>
    tpu.wait_dma2 semaphore(%41 : memref<!tpu.dma_semaphore, #tpu.memory_space<semaphore_mem>>) src(%38 : memref<1x32xf32, #tpu.memory_space<any>>) dst(%39 : memref<1x32xf32, #tpu.memory_space<vmem>>)
    %c4_i32 = arith.constant 4 : i32
    %42 = arith.addi %17, %c4_i32 : i32
    %c4_i32_27 = arith.constant 4 : i32
    %43 = arith.addi %17, %c4_i32_27 : i32
    %c0_i32_28 = arith.constant 0 : i32
    %c0_i32_29 = arith.constant 0 : i32
    %44 = tpu.memref_slice %arg4[%c0_i32_28, %c0_i32_29] : memref<100x32xf32, #tpu.memory_space<any>> -> memref<1x32xf32, #tpu.memory_space<any>>
    %c0_i32_30 = arith.constant 0 : i32
    %45 = tpu.memref_slice %arg10[%42, %c0_i32_30] : memref<16x32xf32, #tpu.memory_space<vmem>> -> memref<1x32xf32, #tpu.memory_space<vmem>>
    %46 = tpu.memref_slice %arg11[%43] : memref<16x!tpu.dma_semaphore, #tpu.memory_space<semaphore_mem>> -> memref<1x!tpu.dma_semaphore, #tpu.memory_space<semaphore_mem>>
    %47 = tpu.memref_squeeze %46 : memref<1x!tpu.dma_semaphore, #tpu.memory_space<semaphore_mem>> -> memref<!tpu.dma_semaphore, #tpu.memory_space<semaphore_mem>>
    tpu.wait_dma2 semaphore(%47 : memref<!tpu.dma_semaphore, #tpu.memory_space<semaphore_mem>>) src(%44 : memref<1x32xf32, #tpu.memory_space<any>>) dst(%45 : memref<1x32xf32, #tpu.memory_space<vmem>>)
    %c5_i32 = arith.constant 5 : i32
    %48 = arith.addi %17, %c5_i32 : i32
    %c5_i32_31 = arith.constant 5 : i32
    %49 = arith.addi %17, %c5_i32_31 : i32
    %c0_i32_32 = arith.constant 0 : i32
    %c0_i32_33 = arith.constant 0 : i32
    %50 = tpu.memref_slice %arg4[%c0_i32_32, %c0_i32_33] : memref<100x32xf32, #tpu.memory_space<any>> -> memref<1x32xf32, #tpu.memory_space<any>>
    %c0_i32_34 = arith.constant 0 : i32
    %51 = tpu.memref_slice %arg10[%48, %c0_i32_34] : memref<16x32xf32, #tpu.memory_space<vmem>> -> memref<1x32xf32, #tpu.memory_space<vmem>>
    %52 = tpu.memref_slice %arg11[%49] : memref<16x!tpu.dma_semaphore, #tpu.memory_space<semaphore_mem>> -> memref<1x!tpu.dma_semaphore, #tpu.memory_space<semaphore_mem>>
    %53 = tpu.memref_squeeze %52 : memref<1x!tpu.dma_semaphore, #tpu.memory_space<semaphore_mem>> -> memref<!tpu.dma_semaphore, #tpu.memory_space<semaphore_mem>>
    tpu.wait_dma2 semaphore(%53 : memref<!tpu.dma_semaphore, #tpu.memory_space<semaphore_mem>>) src(%50 : memref<1x32xf32, #tpu.memory_space<any>>) dst(%51 : memref<1x32xf32, #tpu.memory_space<vmem>>)
    %c6_i32 = arith.constant 6 : i32
    %54 = arith.addi %17, %c6_i32 : i32
    %c6_i32_35 = arith.constant 6 : i32
    %55 = arith.addi %17, %c6_i32_35 : i32
    %c0_i32_36 = arith.constant 0 : i32
    %c0_i32_37 = arith.constant 0 : i32
    %56 = tpu.memref_slice %arg4[%c0_i32_36, %c0_i32_37] : memref<100x32xf32, #tpu.memory_space<any>> -> memref<1x32xf32, #tpu.memory_space<any>>
    %c0_i32_38 = arith.constant 0 : i32
    %57 = tpu.memref_slice %arg10[%54, %c0_i32_38] : memref<16x32xf32, #tpu.memory_space<vmem>> -> memref<1x32xf32, #tpu.memory_space<vmem>>
    %58 = tpu.memref_slice %arg11[%55] : memref<16x!tpu.dma_semaphore, #tpu.memory_space<semaphore_mem>> -> memref<1x!tpu.dma_semaphore, #tpu.memory_space<semaphore_mem>>
    %59 = tpu.memref_squeeze %58 : memref<1x!tpu.dma_semaphore, #tpu.memory_space<semaphore_mem>> -> memref<!tpu.dma_semaphore, #tpu.memory_space<semaphore_mem>>
    tpu.wait_dma2 semaphore(%59 : memref<!tpu.dma_semaphore, #tpu.memory_space<semaphore_mem>>) src(%56 : memref<1x32xf32, #tpu.memory_space<any>>) dst(%57 : memref<1x32xf32, #tpu.memory_space<vmem>>)
    %c7_i32 = arith.constant 7 : i32
    %60 = arith.addi %17, %c7_i32 : i32
    %c7_i32_39 = arith.constant 7 : i32
    %61 = arith.addi %17, %c7_i32_39 : i32
    %c0_i32_40 = arith.constant 0 : i32
    %c0_i32_41 = arith.constant 0 : i32
    %62 = tpu.memref_slice %arg4[%c0_i32_40, %c0_i32_41] : memref<100x32xf32, #tpu.memory_space<any>> -> memref<1x32xf32, #tpu.memory_space<any>>
    %c0_i32_42 = arith.constant 0 : i32
    %63 = tpu.memref_slice %arg10[%60, %c0_i32_42] : memref<16x32xf32, #tpu.memory_space<vmem>> -> memref<1x32xf32, #tpu.memory_space<vmem>>
    %64 = tpu.memref_slice %arg11[%61] : memref<16x!tpu.dma_semaphore, #tpu.memory_space<semaphore_mem>> -> memref<1x!tpu.dma_semaphore, #tpu.memory_space<semaphore_mem>>
    %65 = tpu.memref_squeeze %64 : memref<1x!tpu.dma_semaphore, #tpu.memory_space<semaphore_mem>> -> memref<!tpu.dma_semaphore, #tpu.memory_space<semaphore_mem>>
    tpu.wait_dma2 semaphore(%65 : memref<!tpu.dma_semaphore, #tpu.memory_space<semaphore_mem>>) src(%62 : memref<1x32xf32, #tpu.memory_space<any>>) dst(%63 : memref<1x32xf32, #tpu.memory_space<vmem>>)
    %c8_i32_43 = arith.constant 8 : i32
    %66 = arith.muli %9, %c8_i32_43 : i32
    %67 = tpu.assume_multiple %66, 8 : i32
    %68 = arith.index_cast %67 : i32 to index
    %c0 = arith.constant 0 : index
    %69 = vector.load %arg10[%68, %c0] : memref<16x32xf32, #tpu.memory_space<vmem>>, vector<8x32xf32>
    %c0_44 = arith.constant 0 : index
    %c0_45 = arith.constant 0 : index
    %70 = vector.load %arg5[%c0_44, %c0_45] : memref<8x32xf32, #tpu.memory_space<vmem>>, vector<8x32xf32>
    %c0_46 = arith.constant 0 : index
    %c0_47 = arith.constant 0 : index
    %c0_48 = arith.constant 0 : index
    %71 = vector.load %arg3[%c0_46, %c0_47, %c0_48] : memref<1x8x1xi32, #tpu.memory_space<vmem>>, vector<1x8x1xi32>
    %72 = vector.shape_cast %71 : vector<1x8x1xi32> to vector<8x1xi32>
    %c0_49 = arith.constant 0 : index
    %c0_50 = arith.constant 0 : index
    %73 = vector.load %arg6[%c0_49, %c0_50] : memref<2x32xf32, #tpu.memory_space<vmem>>, vector<2x32xf32>
    %cst = arith.constant 0.000000e+00 : f32
    %74 = vector.broadcast %cst : f32 to vector<8x32xf32>
    %c0_i32_51 = arith.constant 0 : i32
    %75 = vector.broadcast %c0_i32_51 : i32 to vector<8x1xi32>
    %76 = arith.cmpi eq, %72, %75 : vector<8x1xi32>
    %77 = arith.extui %76 : vector<8x1xi1> to vector<8x1xi32>
    %78 = arith.sitofp %77 : vector<8x1xi32> to vector<8x1xf32>
    %79 = vector.extract_strided_slice %73 {offsets = [0, 0], sizes = [1, 32], strides = [1, 1]} : vector<2x32xf32> to vector<1x32xf32>
    %80 = vector.broadcast %78 : vector<8x1xf32> to vector<8x32xf32>
    %81 = vector.broadcast %79 : vector<1x32xf32> to vector<8x32xf32>
    %82 = arith.mulf %80, %81 : vector<8x32xf32>
    %83 = arith.addf %74, %82 : vector<8x32xf32>
    %c1_i32_52 = arith.constant 1 : i32
    %84 = vector.broadcast %c1_i32_52 : i32 to vector<8x1xi32>
    %85 = arith.cmpi eq, %72, %84 : vector<8x1xi32>
    %86 = arith.extui %85 : vector<8x1xi1> to vector<8x1xi32>
    %87 = arith.sitofp %86 : vector<8x1xi32> to vector<8x1xf32>
    %88 = vector.extract_strided_slice %73 {offsets = [1, 0], sizes = [1, 32], strides = [1, 1]} : vector<2x32xf32> to vector<1x32xf32>
    %89 = vector.broadcast %87 : vector<8x1xf32> to vector<8x32xf32>
    %90 = vector.broadcast %88 : vector<1x32xf32> to vector<8x32xf32>
    %91 = arith.mulf %89, %90 : vector<8x32xf32>
    %92 = arith.addf %83, %91 : vector<8x32xf32>
    %93 = arith.addf %69, %70 : vector<8x32xf32>
    %94 = arith.addf %93, %92 : vector<8x32xf32>
    %cst_53 = arith.constant dense<0.000000e+00> : vector<8xf32>
    %95 = vector.multi_reduction <add>, %94, %cst_53 [1] : vector<8x32xf32> to vector<8xf32>
    %96 = vector.shape_cast %95 : vector<8xf32> to vector<8x1xf32>
    %cst_54 = arith.constant 3.200000e+01 : f32
    %97 = vector.broadcast %cst_54 : f32 to vector<8x1xf32>
    %98 = arith.divf %96, %97 : vector<8x1xf32>
    %99 = arith.mulf %94, %94 : vector<8x32xf32>
    %cst_55 = arith.constant dense<0.000000e+00> : vector<8xf32>
    %100 = vector.multi_reduction <add>, %99, %cst_55 [1] : vector<8x32xf32> to vector<8xf32>
    %101 = vector.shape_cast %100 : vector<8xf32> to vector<8x1xf32>
    %cst_56 = arith.constant 3.200000e+01 : f32
    %102 = vector.broadcast %cst_56 : f32 to vector<8x1xf32>
    %103 = arith.divf %101, %102 : vector<8x1xf32>
    %104 = arith.mulf %98, %98 : vector<8x1xf32>
    %105 = arith.subf %103, %104 : vector<8x1xf32>
    %106 = vector.broadcast %98 : vector<8x1xf32> to vector<8x32xf32>
    %107 = arith.subf %94, %106 : vector<8x32xf32>
    %cst_57 = arith.constant 9.99999996E-13 : f32
    %108 = vector.broadcast %cst_57 : f32 to vector<8x1xf32>
    %109 = arith.addf %105, %108 : vector<8x1xf32>
    %110 = math.rsqrt %109 : vector<8x1xf32>
    %111 = vector.broadcast %110 : vector<8x1xf32> to vector<8x32xf32>
    %112 = arith.mulf %107, %111 : vector<8x32xf32>
    %c0_58 = arith.constant 0 : index
    %c0_59 = arith.constant 0 : index
    %113 = vector.load %arg7[%c0_58, %c0_59] : memref<1x32xf32, #tpu.memory_space<vmem>>, vector<1x32xf32>
    %114 = vector.broadcast %113 : vector<1x32xf32> to vector<8x32xf32>
    %115 = arith.mulf %114, %112 : vector<8x32xf32>
    %c0_60 = arith.constant 0 : index
    %c0_61 = arith.constant 0 : index
    %116 = vector.load %arg8[%c0_60, %c0_61] : memref<1x32xf32, #tpu.memory_space<vmem>>, vector<1x32xf32>
    %117 = vector.broadcast %116 : vector<1x32xf32> to vector<8x32xf32>
    %118 = arith.addf %115, %117 : vector<8x32xf32>
    %c0_62 = arith.constant 0 : index
    %c0_63 = arith.constant 0 : index
    %c0_64 = arith.constant 0 : index
    %119 = vector.load %arg9[%c0_62, %c0_63, %c0_64] : memref<1x8x32xf32, #tpu.memory_space<vmem>>, vector<1x8x32xf32>
    %120 = vector.shape_cast %119 : vector<1x8x32xf32> to vector<8x32xf32>
    %121 = vector.shape_cast %118 : vector<8x32xf32> to vector<1x8x32xf32>
    tpu.vector_store %arg9[%c0_62, %c0_63, %c0_64], %121 {strides = array<i32>} : memref<1x8x32xf32, #tpu.memory_space<vmem>>, vector<1x8x32xf32>,
    return
  }
  func.func @transform_0(%arg0: i32, %arg1: i32, %arg2: memref<16xi32, #tpu.memory_space<smem>>) -> (i32, i32, i32) {
    %c0_i32 = arith.constant 0 : i32
    %c0_i32_0 = arith.constant 0 : i32
    return %arg0, %arg1, %c0_i32 : i32, i32, i32
  }
  func.func @transform_2(%arg0: i32, %arg1: i32, %arg2: memref<16xi32, #tpu.memory_space<smem>>) -> (i32, i32) {
    %c0_i32 = arith.constant 0 : i32
    %c0_i32_0 = arith.constant 0 : i32
    return %arg1, %c0_i32 : i32, i32
  }
  func.func @transform_3(%arg0: i32, %arg1: i32, %arg2: memref<16xi32, #tpu.memory_space<smem>>) -> (i32, i32) {
    %c0_i32 = arith.constant 0 : i32
    %c0_i32_0 = arith.constant 0 : i32
    %c0_i32_1 = arith.constant 0 : i32
    return %c0_i32, %c0_i32_0 : i32, i32
  }
  func.func @transform_4(%arg0: i32, %arg1: i32, %arg2: memref<16xi32, #tpu.memory_space<smem>>) -> (i32, i32) {
    %c0_i32 = arith.constant 0 : i32
    %c0_i32_0 = arith.constant 0 : i32
    %c0_i32_1 = arith.constant 0 : i32
    return %c0_i32, %c0_i32_0 : i32, i32
  }
  func.func @transform_5(%arg0: i32, %arg1: i32, %arg2: memref<16xi32, #tpu.memory_space<smem>>) -> (i32, i32) {
    %c0_i32 = arith.constant 0 : i32
    %c0_i32_0 = arith.constant 0 : i32
    %c0_i32_1 = arith.constant 0 : i32
    return %c0_i32, %c0_i32_0 : i32, i32
  }
  func.func @transform_6(%arg0: i32, %arg1: i32, %arg2: memref<16xi32, #tpu.memory_space<smem>>) -> (i32, i32, i32) {
    %c0_i32 = arith.constant 0 : i32
    %c0_i32_0 = arith.constant 0 : i32
    return %arg0, %arg1, %c0_i32 : i32, i32, i32
  }
}

</mosaic_0001>

<llo_original>
// kernel: tpu_custom_call.1
$region0: #{tpu_custom_call.1}
  #allocation0 [shape = 'u32[]', space=smem, size = 0x4, offset = 0x4, fixed_abs, tag = 'smem constant byte address 0x4 - core index']
  #allocation1 [shape = 'u32[72,128]{1,0:T(1,128)}', space=vmem, size = 0x9000, scoped, tag = 'internal scratch']
  #allocation2 [shape = 'f32[16,32]{1,0:T(8,128)}', space=vmem, size = 0x2000, scoped, tag = 'scratch operand']
  #allocation3 [shape = 's32[16]{0}', space=sflag, size = 0x40, scoped, tag = 'scratch operand']
  #allocation4 [shape = 's32[1]{0}', space=sflag, size = 0x4, scoped, tag = 'scoped memory for tpu_custom_call.1']
  #allocation5 [shape = 'u8[512]{0}', space=smem, size = 0x200, scoped, tag = 'prefetched SMEM operand 0']
  #allocation8 [shape = 's32[]', space=sflag, size = 0x4, offset = 0, fixed_abs, tag = 'sflag constant byte address 0x0 - dummy sync flag']
  #allocation9 [shape = 's32[]', space=sflag, size = 0x4, offset = 0, fixed_abs, tag = 'sflag constant byte address 0x0 - dummy sync flag']
  #allocation10 [shape = 's32[]', space=sflag, size = 0x4, offset = 0, fixed_abs, tag = 'sflag constant byte address 0x0 - dummy sync flag']
  #allocation11 [shape = 's32[]', space=sflag, size = 0x4, offset = 0, fixed_abs, tag = 'sflag constant byte address 0x0 - dummy sync flag']
  #allocation12 [shape = 's32[]', space=sflag, size = 0x4, offset = 0, fixed_abs, tag = 'sflag constant byte address 0x0 - dummy sync flag']
  #allocation13 [shape = 's32[]', space=sflag, size = 0x4, offset = 0, fixed_abs, tag = 'sflag constant byte address 0x0 - dummy sync flag']
  #allocation14 [shape = 's32[]', space=sflag, size = 0x4, offset = 0, fixed_abs, tag = 'sflag constant byte address 0x0 - dummy sync flag']
  #allocation15 [shape = 's32[]', space=sflag, size = 0x4, offset = 0, fixed_abs, tag = 'sflag constant byte address 0x0 - dummy sync flag']
  #allocation16 [shape = 's32[]', space=sflag, size = 0x4, offset = 0, fixed_abs, tag = 'sflag constant byte address 0x0 - dummy sync flag']
  #allocation17 [shape = 's32[]', space=sflag, size = 0x4, offset = 0, fixed_abs, tag = 'sflag constant byte address 0x0 - dummy sync flag']
  #allocation18 [shape = 's32[]', space=sflag, size = 0x4, offset = 0, fixed_abs, tag = 'sflag constant byte address 0x0 - dummy sync flag']
  #allocation19 [shape = 's32[]', space=sflag, size = 0x4, offset = 0, fixed_abs, tag = 'sflag constant byte address 0x0 - dummy sync flag']
  #allocation20 [shape = 's32[]', space=sflag, size = 0x4, offset = 0, fixed_abs, tag = 'sflag constant byte address 0x0 - dummy sync flag']
  #allocation21 [shape = 's32[]', space=sflag, size = 0x4, offset = 0, fixed_abs, tag = 'sflag constant byte address 0x0 - dummy sync flag']
  #allocation22 [shape = 's32[]', space=sflag, size = 0x4, offset = 0, fixed_abs, tag = 'sflag constant byte address 0x0 - dummy sync flag']
  #allocation23 [shape = 's32[]', space=sflag, size = 0x4, offset = 0, fixed_abs, tag = 'sflag constant byte address 0x0 - dummy sync flag']
  %s0 = inlined_call_operand.vmem [shape: s32[16], index: 0, kind: input, shape index: {}]
  %s1 = inlined_call_operand.vmem [shape: s32[2,8,1], index: 1, kind: input, shape index: {}]
  %s2 = inlined_call_operand.vmem [shape: f32[100,32], index: 2, kind: input, shape index: {}]
  %s3 = inlined_call_operand.vmem [shape: f32[16,32], index: 3, kind: input, shape index: {}]
  %s4 = inlined_call_operand.vmem [shape: f32[2,32], index: 4, kind: input, shape index: {}]
  %s5 = inlined_call_operand.vmem [shape: f32[1,32], index: 5, kind: input, shape index: {}]
  %s6 = inlined_call_operand.vmem [shape: f32[1,32], index: 6, kind: input, shape index: {}]
  %s7 = inlined_call_operand.hbm [shape: f32[2,8,32], index: 7, kind: output, shape index: {}]
  %s8 = sld [smem:[#allocation0]]
  $region541: #{tpu_custom_call.1} parent=0
    _
  %s10 = ssub.s32 1, %s8
  %s11 = scalar_select 0, %s10, %s8
  %s13 = sshll.u32 %s0, 4
  %s14 = int_to_ptr.vmem [resolvable:$true] %s13
  %16 = dma.vmem_to_smem %s14, 16, [#allocation5], [#allocation4]
  %18 = dma.done [#allocation4], 16
  %19 = sfence
  $region1: #{tpu_custom_call.1} parent=0
    #allocation6 [shape = 'u8[8192]{0}', space=vmem, size = 0x2000, scoped, tag = 'output window, operand 0']
    #allocation7 [shape = 's32[2]{0}', space=sflag, size = 0x8, scoped, tag = 'scoped memory for tpu_custom_call.1']
    %20 = vsyncpa [#allocation7], 0
    %s21 = scalar_lea.sflag [#allocation7], 1
    %22 = vsyncpa %s21, 0
    loop: start=0, step=1, limit=4
    $region2: #{tpu_custom_call.1} parent=1 // loop_pre_header
      _
    $region3: #{tpu_custom_call.1} parent=1 // loop_header
      %s24 = sphi 0, %s28
      %p25 = scmp.ge.s32.totalorder %s24, 4
      %s31 = sphi 0, %s43
      %s32 = sphi 0, %s39
      %s33 = sphi 0, %s31
      %s34 = sphi 0, %s32
      %s35 = sphi 0, %s33
      %s36 = sphi 0, %s34
      %s48 = sphi 0, %s50
      %s51 = sphi 0, %s48
      %s52 = sphi 0, %s51
      %s68 = sphi 0, %s52
      %s74 = sphi 0, %s76
      %s77 = sphi 0, %s74
      %s78 = sphi 0, %s77
      %s94 = sphi 0, %s78
      %s98 = sphi 0, %s98
      %s100 = sphi 0, %s98
      %s101 = sphi 0, %s100
      %s115 = sphi 0, %s101
      %s119 = sphi 0, %s119
      %s121 = sphi 0, %s119
      %s122 = sphi 0, %s121
      %s136 = sphi 0, %s122
      %s140 = sphi 0, %s140
      %s142 = sphi 0, %s140
      %s143 = sphi 0, %s142
      %s157 = sphi 0, %s143
      %s165 = sphi 0, %s167
      %s168 = sphi 0, %s165
      %s169 = sphi 0, %s168
      %s185 = sphi 0, %s169
    $region4: #{tpu_custom_call.1} parent=1 // loop_header_branch
      %27 = sbr.rel (%p25) target = $region8
    $region5: #{tpu_custom_call.1} parent=1 // loop_body
      %s29 = ssub.s32 %s24, 1
      %s30 = ssub.s32 %s24, 2
      %s37 = sadd.s32 1, %s32
      %p38 = scmp.ge.s32.totalorder %s37, 1
      %s39 = scalar_select %p38, 0, %s37
      %s40 = sadd.s32 1, %s31
      %s41 = scalar_select %p38, %s40, %s31
      %p42 = scmp.ge.s32.totalorder %s41, 2
      %s43 = scalar_select %p42, 0, %s41
      %s44 = ssub.s32 %s31, %s43
      %s45 = ssub.s32 %s32, %s39
      %s46 = sor.u32 %s44, %s45
      %p47 = scmp.eq.s32.totalorder %s46, 0
      %s49 = sadd.s32 %s48, 1
      %s50 = scalar_select %p47, %s48, %s49
      %p53 = pneg %p47
      %p54 = scmp.eq.s32.totalorder %s24, 1
      %p55 = por %p53, %p54
      %p56 = scmp.ne.s32.totalorder %s48, %s51
      %p57 = scmp.eq.s32.totalorder %s24, 0
      %p58 = por %p56, %p57
      %p59 = scmp.ne.s32.totalorder %s48, %s51
      %p60 = scmp.eq.s32.totalorder %s29, 1
      %p61 = por %p59, %p60
      %p62 = scmp.ne.s32.totalorder %s51, %s52
      %p63 = scmp.eq.s32.totalorder %s29, 0
      %p64 = por %p62, %p63
      %p65 = scmp.ne.s32.totalorder %s51, %s52
      %p66 = scmp.eq.s32.totalorder %s30, 1
      %p67 = por %p65, %p66
      %p69 = scmp.ne.s32.totalorder %s52, %s68
      %p70 = scmp.eq.s32.totalorder %s30, 0
      %p71 = por %p69, %p70
      %s72 = ssub.s32 %s32, %s39
      %p73 = scmp.eq.s32.totalorder %s72, 0
      %s75 = sadd.s32 %s74, 1
      %s76 = scalar_select %p73, %s74, %s75
      %p79 = pneg %p73
      %p80 = scmp.eq.s32.totalorder %s24, 1
      %p81 = por %p79, %p80
      %p82 = scmp.ne.s32.totalorder %s74, %s77
      %p83 = scmp.eq.s32.totalorder %s24, 0
      %p84 = por %p82, %p83
      %p85 = scmp.ne.s32.totalorder %s74, %s77
      %p86 = scmp.eq.s32.totalorder %s29, 1
      %p87 = por %p85, %p86
      %p88 = scmp.ne.s32.totalorder %s77, %s78
      %p89 = scmp.eq.s32.totalorder %s29, 0
      %p90 = por %p88, %p89
      %p91 = scmp.ne.s32.totalorder %s77, %s78
      %p92 = scmp.eq.s32.totalorder %s30, 1
      %p93 = por %p91, %p92
      %p95 = scmp.ne.s32.totalorder %s78, %s94
      %p96 = scmp.eq.s32.totalorder %s30, 0
      %p97 = por %p95, %p96
      %s99 = sadd.s32 %s98, 1
      %p102 = scmp.eq.s32.totalorder %s24, 1
      %p103 = scmp.ne.s32.totalorder %s98, %s100
      %p104 = scmp.eq.s32.totalorder %s24, 0
      %p105 = por %p103, %p104
      %p106 = scmp.ne.s32.totalorder %s98, %s100
      %p107 = scmp.eq.s32.totalorder %s29, 1
      %p108 = por %p106, %p107
      %p109 = scmp.ne.s32.totalorder %s100, %s101
      %p110 = scmp.eq.s32.totalorder %s29, 0
      %p111 = por %p109, %p110
      %p112 = scmp.ne.s32.totalorder %s100, %s101
      %p113 = scmp.eq.s32.totalorder %s30, 1
      %p114 = por %p112, %p113
      %p116 = scmp.ne.s32.totalorder %s101, %s115
      %p117 = scmp.eq.s32.totalorder %s30, 0
      %p118 = por %p116, %p117
      %s120 = sadd.s32 %s119, 1
      %p123 = scmp.eq.s32.totalorder %s24, 1
      %p124 = scmp.ne.s32.totalorder %s119, %s121
      %p125 = scmp.eq.s32.totalorder %s24, 0
      %p126 = por %p124, %p125
      %p127 = scmp.ne.s32.totalorder %s119, %s121
      %p128 = scmp.eq.s32.totalorder %s29, 1
      %p129 = por %p127, %p128
      %p130 = scmp.ne.s32.totalorder %s121, %s122
      %p131 = scmp.eq.s32.totalorder %s29, 0
      %p132 = por %p130, %p131
      %p133 = scmp.ne.s32.totalorder %s121, %s122
      %p134 = scmp.eq.s32.totalorder %s30, 1
      %p135 = por %p133, %p134
      %p137 = scmp.ne.s32.totalorder %s122, %s136
      %p138 = scmp.eq.s32.totalorder %s30, 0
      %p139 = por %p137, %p138
      %s141 = sadd.s32 %s140, 1
      %p144 = scmp.eq.s32.totalorder %s24, 1
      %p145 = scmp.ne.s32.totalorder %s140, %s142
      %p146 = scmp.eq.s32.totalorder %s24, 0
      %p147 = por %p145, %p146
      %p148 = scmp.ne.s32.totalorder %s140, %s142
      %p149 = scmp.eq.s32.totalorder %s29, 1
      %p150 = por %p148, %p149
      %p151 = scmp.ne.s32.totalorder %s142, %s143
      %p152 = scmp.eq.s32.totalorder %s29, 0
      %p153 = por %p151, %p152
      %p154 = scmp.ne.s32.totalorder %s142, %s143
      %p155 = scmp.eq.s32.totalorder %s30, 1
      %p156 = por %p154, %p155
      %p158 = scmp.ne.s32.totalorder %s143, %s157
      %p159 = scmp.eq.s32.totalorder %s30, 0
      %p160 = por %p158, %p159
      %s161 = ssub.s32 %s31, %s43
      %s162 = ssub.s32 %s32, %s39
      %s163 = sor.u32 %s161, %s162
      %p164 = scmp.eq.s32.totalorder %s163, 0
      %s166 = sadd.s32 %s165, 1
      %s167 = scalar_select %p164, %s165, %s166
      %p170 = pneg %p164
      %p171 = scmp.eq.s32.totalorder %s24, 1
      %p172 = por %p170, %p171
      %p173 = scmp.ne.s32.totalorder %s165, %s168
      %p174 = scmp.eq.s32.totalorder %s24, 0
      %p175 = por %p173, %p174
      %p176 = scmp.ne.s32.totalorder %s165, %s168
      %p177 = scmp.eq.s32.totalorder %s29, 1
      %p178 = por %p176, %p177
      %p179 = scmp.ne.s32.totalorder %s168, %s169
      %p180 = scmp.eq.s32.totalorder %s29, 0
      %p181 = por %p179, %p180
      %p182 = scmp.ne.s32.totalorder %s168, %s169
      %p183 = scmp.eq.s32.totalorder %s30, 1
      %p184 = por %p182, %p183
      %p186 = scmp.ne.s32.totalorder %s169, %s185
      %p187 = scmp.eq.s32.totalorder %s30, 0
      %p188 = por %p186, %p187
      %p189 = scmp.le.s32.totalorder 1, %s24
      %p190 = scmp.lt.s32.totalorder %s24, 3
      %p191 = pnand %p189, %p190
      %p192 = pneg %p191
      // Predicated region
      $region9: #{tpu_custom_call.1} parent=5 // pred_check
        _
      $region10: #{tpu_custom_call.1} parent=5 // pred_check_branch
        %194 = sbr.rel (%p191) target = $region12
      $region11: #{tpu_custom_call.1} parent=5 // pred_region
        %s195 = ssub.s32 %s24, 1
        // Predicated region
        $region13: #{tpu_custom_call.1} parent=11 // pred_check
          %p196 = pneg %p90
        $region14: #{tpu_custom_call.1} parent=11 // pred_check_branch
          %198 = sbr.rel (%p196) target = $region16
        $region15: #{tpu_custom_call.1} parent=11 // pred_region
          %p199 = scmp.lt.s32.totalorder %s34, 1
          %s200 = scalar_select %p199, %s34, 1
          %s201 = smul.addr %s200, 8
          %s202 = scalar_lea.vmem %s3, %s201
        $region16: #{tpu_custom_call.1} parent=11 // pred_fallthru
          _
        // Predicated region
        $region17: #{tpu_custom_call.1} parent=11 // pred_check
          %p203 = pneg %p111
        $region18: #{tpu_custom_call.1} parent=11 // pred_check_branch
          %205 = sbr.rel (%p203) target = $region20
        $region19: #{tpu_custom_call.1} parent=11 // pred_region
          _
        $region20: #{tpu_custom_call.1} parent=11 // pred_fallthru
          _
        // Predicated region
        $region21: #{tpu_custom_call.1} parent=11 // pred_check
          %p206 = pneg %p132
        $region22: #{tpu_custom_call.1} parent=11 // pred_check_branch
          %208 = sbr.rel (%p206) target = $region24
        $region23: #{tpu_custom_call.1} parent=11 // pred_region
          _
        $region24: #{tpu_custom_call.1} parent=11 // pred_fallthru
          _
        // Predicated region
        $region25: #{tpu_custom_call.1} parent=11 // pred_check
          %p209 = pneg %p153
        $region26: #{tpu_custom_call.1} parent=11 // pred_check_branch
          %211 = sbr.rel (%p209) target = $region28
        $region27: #{tpu_custom_call.1} parent=11 // pred_region
          _
        $region28: #{tpu_custom_call.1} parent=11 // pred_fallthru
          _
      $region12: #{tpu_custom_call.1} parent=5 // pred_fallthru
        _
      %p212 = scmp.lt.s32.totalorder %s24, 2
      // Predicated region
      $region29: #{tpu_custom_call.1} parent=5 // pred_check
        %p213 = pneg %p212
      $region30: #{tpu_custom_call.1} parent=5 // pred_check_branch
        %215 = sbr.rel (%p213) target = $region32
      $region31: #{tpu_custom_call.1} parent=5 // pred_region
        // Predicated region
        $region33: #{tpu_custom_call.1} parent=31 // pred_check
          %p216 = pneg %p58
        $region34: #{tpu_custom_call.1} parent=31 // pred_check_branch
          %218 = sbr.rel (%p216) target = $region36
        $region35: #{tpu_custom_call.1} parent=31 // pred_region
          %p219 = scmp.lt.s32.totalorder %s31, 1
          %s220 = scalar_select %p219, %s31, 1
          %p221 = scmp.lt.s32.totalorder %s32, 0
          %s222 = scalar_select %p221, %s32, 0
          %s223 = sadd.s32 %s222, %s220
          %s224 = smul.addr %s223, 8
          %s225 = scalar_lea.vmem %s1, %s224
        $region36: #{tpu_custom_call.1} parent=31 // pred_fallthru
          _
      $region32: #{tpu_custom_call.1} parent=5 // pred_fallthru
        _
      %p226 = scmp.le.s32.totalorder 1, %s24
      %p227 = scmp.lt.s32.totalorder %s24, 3
      %p228 = pnand %p226, %p227
      %p229 = pneg %p228
      // Predicated region
      $region37: #{tpu_custom_call.1} parent=5 // pred_check
        _
      $region38: #{tpu_custom_call.1} parent=5 // pred_check_branch
        %231 = sbr.rel (%p228) target = $region40
      $region39: #{tpu_custom_call.1} parent=5 // pred_region
        %s232 = ssub.s32 %s24, 1
        %p233 = scmp.lt.s32.totalorder %s33, 1
        %s234 = scalar_select %p233, %s33, 1
        %p235 = scmp.lt.s32.totalorder %s34, 0
        %s236 = scalar_select %p235, %s34, 0
        %s237 = sadd.s32 %s236, %s234
        %s238 = smul.addr %s237, 8
        %s239 = scalar_lea.vmem %s1, %s238
        %p240 = pneg %p64
        %p241 = pneg %p61
        %p242 = scmp.lt.s32.totalorder %s34, 1
        %s243 = scalar_select %p242, %s34, 1
        %s244 = smul.addr %s243, 8
        %s245 = scalar_lea.vmem %s3, %s244
        %p246 = pneg %p90
        %p247 = pneg %p87
        %p248 = pneg %p111
        %p249 = pneg %p108
        %p250 = pneg %p132
        %p251 = pneg %p129
        %p252 = pneg %p153
        %p253 = pneg %p150
        %p254 = pneg %p181
        %p255 = pneg %p178
        %s256 = sand.u32 %s168, 1
        %s257 = scalar_lea.sflag [#allocation7], %s256
        %s258 = sand.u32 %s168, 1
        %s259 = smul.addr %s258, 8
        %s260 = scalar_lea.vmem [#allocation6], %s259
        %p261 = scmp.lt.s32.totalorder %s33, 1
        %s262 = scalar_select %p261, %s33, 1
        %p263 = scmp.lt.s32.totalorder %s34, 0
        %s264 = scalar_select %p263, %s34, 0
        %s265 = sadd.s32 %s264, %s262
        %s266 = smul.addr %s265, 8
        %s267 = scalar_lea.vmem %s1, %s266
        %p268 = scmp.lt.s32.totalorder %s34, 1
        %s269 = scalar_select %p268, %s34, 1
        %s270 = smul.addr %s269, 8
        %s271 = scalar_lea.vmem %s3, %s270
        %p272 = scmp.lt.s32.totalorder %s34, 0
        %s273 = ssub.s32 0, %s34
        %s274 = scalar_select %p272, %s273, %s34
        %s275 = sand.u32 %s274, 1
        %s276 = ssub.s32 0, %s275
        %s277 = scalar_select %p272, %s276, %s275
        %p278 = scmp.ne.s32.totalorder %s277, 0
        %p279 = scmp.lt.s32.totalorder %s277, 0
        %p280 = pnand %p279, %p278
        %p281 = pneg %p280
        %s282 = sadd.s32 %s277, 2
        %s283 = scalar_select %p281, %s282, %s277
        %p284 = scmp.eq.s32.totalorder %s34, 0
        // Predicated region
        $region41: #{tpu_custom_call.1} parent=39 // pred_check
          %p285 = pneg %p284
        $region42: #{tpu_custom_call.1} parent=39 // pred_check_branch
          %287 = sbr.rel (%p285) target = $region44
        $region43: #{tpu_custom_call.1} parent=39 // pred_region
          %s288 = smul.u32 %s33, 8
          %s289 = sld [smem:[#allocation5 + %s288]]
          %s290 = scalar_lea.vmem %s2, %s289
          // Predicated region
          $region45: #{tpu_custom_call.1} parent=43 // pred_check
            _
          $region46: #{tpu_custom_call.1} parent=43 // pred_check_branch
            %292 = sbr.rel target = $region48
          $region47: #{tpu_custom_call.1} parent=43 // pred_region
            // Predicated region
            $region60: #{tpu_custom_call.1} parent=47 // pred_check
              _
            $region61: #{tpu_custom_call.1} parent=47 // pred_check_branch
              %308 = sbr.rel (0) target = $region63
            $region62: #{tpu_custom_call.1} parent=47 // pred_region
              %s310 = ssub.s32 2, 1
              loop: start=0, step=1, limit=1
              $region64: #{tpu_custom_call.1} parent=62 // loop_pre_header
                _
              $region65: #{tpu_custom_call.1} parent=62 // loop_header
                %s312 = sphi 0, %s316
                %p313 = scmp.ge.s32.totalorder %s312, 1
                %s317 = sphi %s290, %s290
                %s318 = sphi [#allocation2], [#allocation2]
              $region66: #{tpu_custom_call.1} parent=62 // loop_header_branch
                %315 = sbr.rel (%p313) target = $region70
              $region67: #{tpu_custom_call.1} parent=62 // loop_body
                %v319 = vld [vmem:[%s317] sm:%s310]
                %320 = vst [vmem:[%s318] sm:%s310] %v319
              $region68: #{tpu_custom_call.1} parent=62 // loop_footer
                %s316 = sadd.s32 1, %s312
              $region69: #{tpu_custom_call.1} parent=62 // loop_footer_branch
                %311 = sbr.rel target = $region65
              $region70: #{tpu_custom_call.1} parent=62 // loop_exit
                _
            $region63: #{tpu_custom_call.1} parent=47 // pred_fallthru
              _
          $region48: #{tpu_custom_call.1} parent=43 // pred_fallthru
            _
          // Predicated region
          $region49: #{tpu_custom_call.1} parent=43 // pred_check
            _
          $region50: #{tpu_custom_call.1} parent=43 // pred_check_branch
            %294 = sbr.rel (0) target = $region52
          $region51: #{tpu_custom_call.1} parent=43 // pred_region
            %s296 = ssub.s32 2, 1
            loop: start=0, step=1, limit=1
            $region53: #{tpu_custom_call.1} parent=51 // loop_pre_header
              _
            $region54: #{tpu_custom_call.1} parent=51 // loop_header
              %s298 = sphi 0, %s302
              %p299 = scmp.ge.s32.totalorder %s298, 1
              %s303 = sphi %s290, %s290
              %s304 = sphi [#allocation2], [#allocation2]
            $region55: #{tpu_custom_call.1} parent=51 // loop_header_branch
              %301 = sbr.rel (%p299) target = $region59
            $region56: #{tpu_custom_call.1} parent=51 // loop_body
              %v305 = vld [vmem:[%s303] sm:%s296]
              %306 = vst [vmem:[%s304] sm:%s296] %v305
            $region57: #{tpu_custom_call.1} parent=51 // loop_footer
              %s302 = sadd.s32 1, %s298
            $region58: #{tpu_custom_call.1} parent=51 // loop_footer_branch
              %297 = sbr.rel target = $region54
            $region59: #{tpu_custom_call.1} parent=51 // loop_exit
              _
          $region52: #{tpu_custom_call.1} parent=43 // pred_fallthru
            _
          // Predicated region
          $region71: #{tpu_custom_call.1} parent=43 // pred_check
            _
          $region72: #{tpu_custom_call.1} parent=43 // pred_check_branch
            %323 = sbr.rel (0) target = $region74
          $region73: #{tpu_custom_call.1} parent=43 // pred_region
            %324 = vsyncadd [#allocation3], 16
          $region74: #{tpu_custom_call.1} parent=43 // pred_fallthru
            _
          %s325 = sadd.s32 %s288, 1
          %s326 = sld [smem:[#allocation5 + %s325]]
          %s327 = scalar_lea.vmem %s2, %s326
          %s328 = scalar_lea.vmem [#allocation2], 1
          %s329 = scalar_lea.sflag [#allocation3], 1
          // Predicated region
          $region75: #{tpu_custom_call.1} parent=43 // pred_check
            _
          $region76: #{tpu_custom_call.1} parent=43 // pred_check_branch
            %331 = sbr.rel target = $region78
          $region77: #{tpu_custom_call.1} parent=43 // pred_region
            // Predicated region
            $region90: #{tpu_custom_call.1} parent=77 // pred_check
              _
            $region91: #{tpu_custom_call.1} parent=77 // pred_check_branch
              %347 = sbr.rel (0) target = $region93
            $region92: #{tpu_custom_call.1} parent=77 // pred_region
              %s349 = ssub.s32 2, 1
              loop: start=0, step=1, limit=1
              $region94: #{tpu_custom_call.1} parent=92 // loop_pre_header
                _
              $region95: #{tpu_custom_call.1} parent=92 // loop_header
                %s351 = sphi 0, %s355
                %p352 = scmp.ge.s32.totalorder %s351, 1
                %s356 = sphi %s327, %s327
                %s357 = sphi %s328, %s328
              $region96: #{tpu_custom_call.1} parent=92 // loop_header_branch
                %354 = sbr.rel (%p352) target = $region100
              $region97: #{tpu_custom_call.1} parent=92 // loop_body
                %v358 = vld [vmem:[%s356] sm:%s349]
                %359 = vst [vmem:[%s357] sm:%s349] %v358
              $region98: #{tpu_custom_call.1} parent=92 // loop_footer
                %s355 = sadd.s32 1, %s351
              $region99: #{tpu_custom_call.1} parent=92 // loop_footer_branch
                %350 = sbr.rel target = $region95
              $region100: #{tpu_custom_call.1} parent=92 // loop_exit
                _
            $region93: #{tpu_custom_call.1} parent=77 // pred_fallthru
              _
          $region78: #{tpu_custom_call.1} parent=43 // pred_fallthru
            _
          // Predicated region
          $region79: #{tpu_custom_call.1} parent=43 // pred_check
            _
          $region80: #{tpu_custom_call.1} parent=43 // pred_check_branch
            %333 = sbr.rel (0) target = $region82
          $region81: #{tpu_custom_call.1} parent=43 // pred_region
            %s335 = ssub.s32 2, 1
            loop: start=0, step=1, limit=1
            $region83: #{tpu_custom_call.1} parent=81 // loop_pre_header
              _
            $region84: #{tpu_custom_call.1} parent=81 // loop_header
              %s337 = sphi 0, %s341
              %p338 = scmp.ge.s32.totalorder %s337, 1
              %s342 = sphi %s327, %s327
              %s343 = sphi %s328, %s328
            $region85: #{tpu_custom_call.1} parent=81 // loop_header_branch
              %340 = sbr.rel (%p338) target = $region89
            $region86: #{tpu_custom_call.1} parent=81 // loop_body
              %v344 = vld [vmem:[%s342] sm:%s335]
              %345 = vst [vmem:[%s343] sm:%s335] %v344
            $region87: #{tpu_custom_call.1} parent=81 // loop_footer
              %s341 = sadd.s32 1, %s337
            $region88: #{tpu_custom_call.1} parent=81 // loop_footer_branch
              %336 = sbr.rel target = $region84
            $region89: #{tpu_custom_call.1} parent=81 // loop_exit
              _
          $region82: #{tpu_custom_call.1} parent=43 // pred_fallthru
            _
          // Predicated region
          $region101: #{tpu_custom_call.1} parent=43 // pred_check
            _
          $region102: #{tpu_custom_call.1} parent=43 // pred_check_branch
            %362 = sbr.rel (0) target = $region104
          $region103: #{tpu_custom_call.1} parent=43 // pred_region
            %363 = vsyncadd %s329, 16
          $region104: #{tpu_custom_call.1} parent=43 // pred_fallthru
            _
          %s364 = sadd.s32 %s288, 2
          %s365 = sld [smem:[#allocation5 + %s364]]
          %s366 = scalar_lea.vmem %s2, %s365
          %s367 = scalar_lea.vmem [#allocation2], 2
          %s368 = scalar_lea.sflag [#allocation3], 2
          // Predicated region
          $region105: #{tpu_custom_call.1} parent=43 // pred_check
            _
          $region106: #{tpu_custom_call.1} parent=43 // pred_check_branch
            %370 = sbr.rel target = $region108
          $region107: #{tpu_custom_call.1} parent=43 // pred_region
            // Predicated region
            $region120: #{tpu_custom_call.1} parent=107 // pred_check
              _
            $region121: #{tpu_custom_call.1} parent=107 // pred_check_branch
              %386 = sbr.rel (0) target = $region123
            $region122: #{tpu_custom_call.1} parent=107 // pred_region
              %s388 = ssub.s32 2, 1
              loop: start=0, step=1, limit=1
              $region124: #{tpu_custom_call.1} parent=122 // loop_pre_header
                _
              $region125: #{tpu_custom_call.1} parent=122 // loop_header
                %s390 = sphi 0, %s394
                %p391 = scmp.ge.s32.totalorder %s390, 1
                %s395 = sphi %s366, %s366
                %s396 = sphi %s367, %s367
              $region126: #{tpu_custom_call.1} parent=122 // loop_header_branch
                %393 = sbr.rel (%p391) target = $region130
              $region127: #{tpu_custom_call.1} parent=122 // loop_body
                %v397 = vld [vmem:[%s395] sm:%s388]
                %398 = vst [vmem:[%s396] sm:%s388] %v397
              $region128: #{tpu_custom_call.1} parent=122 // loop_footer
                %s394 = sadd.s32 1, %s390
              $region129: #{tpu_custom_call.1} parent=122 // loop_footer_branch
                %389 = sbr.rel target = $region125
              $region130: #{tpu_custom_call.1} parent=122 // loop_exit
                _
            $region123: #{tpu_custom_call.1} parent=107 // pred_fallthru
              _
          $region108: #{tpu_custom_call.1} parent=43 // pred_fallthru
            _
          // Predicated region
          $region109: #{tpu_custom_call.1} parent=43 // pred_check
            _
          $region110: #{tpu_custom_call.1} parent=43 // pred_check_branch
            %372 = sbr.rel (0) target = $region112
          $region111: #{tpu_custom_call.1} parent=43 // pred_region
            %s374 = ssub.s32 2, 1
            loop: start=0, step=1, limit=1
            $region113: #{tpu_custom_call.1} parent=111 // loop_pre_header
              _
            $region114: #{tpu_custom_call.1} parent=111 // loop_header
              %s376 = sphi 0, %s380
              %p377 = scmp.ge.s32.totalorder %s376, 1
              %s381 = sphi %s366, %s366
              %s382 = sphi %s367, %s367
            $region115: #{tpu_custom_call.1} parent=111 // loop_header_branch
              %379 = sbr.rel (%p377) target = $region119
            $region116: #{tpu_custom_call.1} parent=111 // loop_body
              %v383 = vld [vmem:[%s381] sm:%s374]
              %384 = vst [vmem:[%s382] sm:%s374] %v383
            $region117: #{tpu_custom_call.1} parent=111 // loop_footer
              %s380 = sadd.s32 1, %s376
            $region118: #{tpu_custom_call.1} parent=111 // loop_footer_branch
              %375 = sbr.rel target = $region114
            $region119: #{tpu_custom_call.1} parent=111 // loop_exit
              _
          $region112: #{tpu_custom_call.1} parent=43 // pred_fallthru
            _
          // Predicated region
          $region131: #{tpu_custom_call.1} parent=43 // pred_check
            _
          $region132: #{tpu_custom_call.1} parent=43 // pred_check_branch
            %401 = sbr.rel (0) target = $region134
          $region133: #{tpu_custom_call.1} parent=43 // pred_region
            %402 = vsyncadd %s368, 16
          $region134: #{tpu_custom_call.1} parent=43 // pred_fallthru
            _
          %s403 = sadd.s32 %s288, 3
          %s404 = sld [smem:[#allocation5 + %s403]]
          %s405 = scalar_lea.vmem %s2, %s404
          %s406 = scalar_lea.vmem [#allocation2], 3
          %s407 = scalar_lea.sflag [#allocation3], 3
          // Predicated region
          $region135: #{tpu_custom_call.1} parent=43 // pred_check
            _
          $region136: #{tpu_custom_call.1} parent=43 // pred_check_branch
            %409 = sbr.rel target = $region138
          $region137: #{tpu_custom_call.1} parent=43 // pred_region
            // Predicated region
            $region150: #{tpu_custom_call.1} parent=137 // pred_check
              _
            $region151: #{tpu_custom_call.1} parent=137 // pred_check_branch
              %425 = sbr.rel (0) target = $region153
            $region152: #{tpu_custom_call.1} parent=137 // pred_region
              %s427 = ssub.s32 2, 1
              loop: start=0, step=1, limit=1
              $region154: #{tpu_custom_call.1} parent=152 // loop_pre_header
                _
              $region155: #{tpu_custom_call.1} parent=152 // loop_header
                %s429 = sphi 0, %s433
                %p430 = scmp.ge.s32.totalorder %s429, 1
                %s434 = sphi %s405, %s405
                %s435 = sphi %s406, %s406
              $region156: #{tpu_custom_call.1} parent=152 // loop_header_branch
                %432 = sbr.rel (%p430) target = $region160
              $region157: #{tpu_custom_call.1} parent=152 // loop_body
                %v436 = vld [vmem:[%s434] sm:%s427]
                %437 = vst [vmem:[%s435] sm:%s427] %v436
              $region158: #{tpu_custom_call.1} parent=152 // loop_footer
                %s433 = sadd.s32 1, %s429
              $region159: #{tpu_custom_call.1} parent=152 // loop_footer_branch
                %428 = sbr.rel target = $region155
              $region160: #{tpu_custom_call.1} parent=152 // loop_exit
                _
            $region153: #{tpu_custom_call.1} parent=137 // pred_fallthru
              _
          $region138: #{tpu_custom_call.1} parent=43 // pred_fallthru
            _
          // Predicated region
          $region139: #{tpu_custom_call.1} parent=43 // pred_check
            _
          $region140: #{tpu_custom_call.1} parent=43 // pred_check_branch
            %411 = sbr.rel (0) target = $region142
          $region141: #{tpu_custom_call.1} parent=43 // pred_region
            %s413 = ssub.s32 2, 1
            loop: start=0, step=1, limit=1
            $region143: #{tpu_custom_call.1} parent=141 // loop_pre_header
              _
            $region144: #{tpu_custom_call.1} parent=141 // loop_header
              %s415 = sphi 0, %s419
              %p416 = scmp.ge.s32.totalorder %s415, 1
              %s420 = sphi %s405, %s405
              %s421 = sphi %s406, %s406
            $region145: #{tpu_custom_call.1} parent=141 // loop_header_branch
              %418 = sbr.rel (%p416) target = $region149
            $region146: #{tpu_custom_call.1} parent=141 // loop_body
              %v422 = vld [vmem:[%s420] sm:%s413]
              %423 = vst [vmem:[%s421] sm:%s413] %v422
            $region147: #{tpu_custom_call.1} parent=141 // loop_footer
              %s419 = sadd.s32 1, %s415
            $region148: #{tpu_custom_call.1} parent=141 // loop_footer_branch
              %414 = sbr.rel target = $region144
            $region149: #{tpu_custom_call.1} parent=141 // loop_exit
              _
          $region142: #{tpu_custom_call.1} parent=43 // pred_fallthru
            _
          // Predicated region
          $region161: #{tpu_custom_call.1} parent=43 // pred_check
            _
          $region162: #{tpu_custom_call.1} parent=43 // pred_check_branch
            %440 = sbr.rel (0) target = $region164
          $region163: #{tpu_custom_call.1} parent=43 // pred_region
            %441 = vsyncadd %s407, 16
          $region164: #{tpu_custom_call.1} parent=43 // pred_fallthru
            _
          %s442 = sadd.s32 %s288, 4
          %s443 = sld [smem:[#allocation5 + %s442]]
          %s444 = scalar_lea.vmem %s2, %s443
          %s445 = scalar_lea.vmem [#allocation2], 4
          %s446 = scalar_lea.sflag [#allocation3], 4
          // Predicated region
          $region165: #{tpu_custom_call.1} parent=43 // pred_check
            _
          $region166: #{tpu_custom_call.1} parent=43 // pred_check_branch
            %448 = sbr.rel target = $region168
          $region167: #{tpu_custom_call.1} parent=43 // pred_region
            // Predicated region
            $region180: #{tpu_custom_call.1} parent=167 // pred_check
              _
            $region181: #{tpu_custom_call.1} parent=167 // pred_check_branch
              %464 = sbr.rel (0) target = $region183
            $region182: #{tpu_custom_call.1} parent=167 // pred_region
              %s466 = ssub.s32 2, 1
              loop: start=0, step=1, limit=1
              $region184: #{tpu_custom_call.1} parent=182 // loop_pre_header
                _
              $region185: #{tpu_custom_call.1} parent=182 // loop_header
                %s468 = sphi 0, %s472
                %p469 = scmp.ge.s32.totalorder %s468, 1
                %s473 = sphi %s444, %s444
                %s474 = sphi %s445, %s445
              $region186: #{tpu_custom_call.1} parent=182 // loop_header_branch
                %471 = sbr.rel (%p469) target = $region190
              $region187: #{tpu_custom_call.1} parent=182 // loop_body
                %v475 = vld [vmem:[%s473] sm:%s466]
                %476 = vst [vmem:[%s474] sm:%s466] %v475
              $region188: #{tpu_custom_call.1} parent=182 // loop_footer
                %s472 = sadd.s32 1, %s468
              $region189: #{tpu_custom_call.1} parent=182 // loop_footer_branch
                %467 = sbr.rel target = $region185
              $region190: #{tpu_custom_call.1} parent=182 // loop_exit
                _
            $region183: #{tpu_custom_call.1} parent=167 // pred_fallthru
              _
          $region168: #{tpu_custom_call.1} parent=43 // pred_fallthru
            _
          // Predicated region
          $region169: #{tpu_custom_call.1} parent=43 // pred_check
            _
          $region170: #{tpu_custom_call.1} parent=43 // pred_check_branch
            %450 = sbr.rel (0) target = $region172
          $region171: #{tpu_custom_call.1} parent=43 // pred_region
            %s452 = ssub.s32 2, 1
            loop: start=0, step=1, limit=1
            $region173: #{tpu_custom_call.1} parent=171 // loop_pre_header
              _
            $region174: #{tpu_custom_call.1} parent=171 // loop_header
              %s454 = sphi 0, %s458
              %p455 = scmp.ge.s32.totalorder %s454, 1
              %s459 = sphi %s444, %s444
              %s460 = sphi %s445, %s445
            $region175: #{tpu_custom_call.1} parent=171 // loop_header_branch
              %457 = sbr.rel (%p455) target = $region179
            $region176: #{tpu_custom_call.1} parent=171 // loop_body
              %v461 = vld [vmem:[%s459] sm:%s452]
              %462 = vst [vmem:[%s460] sm:%s452] %v461
            $region177: #{tpu_custom_call.1} parent=171 // loop_footer
              %s458 = sadd.s32 1, %s454
            $region178: #{tpu_custom_call.1} parent=171 // loop_footer_branch
              %453 = sbr.rel target = $region174
            $region179: #{tpu_custom_call.1} parent=171 // loop_exit
              _
          $region172: #{tpu_custom_call.1} parent=43 // pred_fallthru
            _
          // Predicated region
          $region191: #{tpu_custom_call.1} parent=43 // pred_check
            _
          $region192: #{tpu_custom_call.1} parent=43 // pred_check_branch
            %479 = sbr.rel (0) target = $region194
          $region193: #{tpu_custom_call.1} parent=43 // pred_region
            %480 = vsyncadd %s446, 16
          $region194: #{tpu_custom_call.1} parent=43 // pred_fallthru
            _
          %s481 = sadd.s32 %s288, 5
          %s482 = sld [smem:[#allocation5 + %s481]]
          %s483 = scalar_lea.vmem %s2, %s482
          %s484 = scalar_lea.vmem [#allocation2], 5
          %s485 = scalar_lea.sflag [#allocation3], 5
          // Predicated region
          $region195: #{tpu_custom_call.1} parent=43 // pred_check
            _
          $region196: #{tpu_custom_call.1} parent=43 // pred_check_branch
            %487 = sbr.rel target = $region198
          $region197: #{tpu_custom_call.1} parent=43 // pred_region
            // Predicated region
            $region210: #{tpu_custom_call.1} parent=197 // pred_check
              _
            $region211: #{tpu_custom_call.1} parent=197 // pred_check_branch
              %503 = sbr.rel (0) target = $region213
            $region212: #{tpu_custom_call.1} parent=197 // pred_region
              %s505 = ssub.s32 2, 1
              loop: start=0, step=1, limit=1
              $region214: #{tpu_custom_call.1} parent=212 // loop_pre_header
                _
              $region215: #{tpu_custom_call.1} parent=212 // loop_header
                %s507 = sphi 0, %s511
                %p508 = scmp.ge.s32.totalorder %s507, 1
                %s512 = sphi %s483, %s483
                %s513 = sphi %s484, %s484
              $region216: #{tpu_custom_call.1} parent=212 // loop_header_branch
                %510 = sbr.rel (%p508) target = $region220
              $region217: #{tpu_custom_call.1} parent=212 // loop_body
                %v514 = vld [vmem:[%s512] sm:%s505]
                %515 = vst [vmem:[%s513] sm:%s505] %v514
              $region218: #{tpu_custom_call.1} parent=212 // loop_footer
                %s511 = sadd.s32 1, %s507
              $region219: #{tpu_custom_call.1} parent=212 // loop_footer_branch
                %506 = sbr.rel target = $region215
              $region220: #{tpu_custom_call.1} parent=212 // loop_exit
                _
            $region213: #{tpu_custom_call.1} parent=197 // pred_fallthru
              _
          $region198: #{tpu_custom_call.1} parent=43 // pred_fallthru
            _
          // Predicated region
          $region199: #{tpu_custom_call.1} parent=43 // pred_check
            _
          $region200: #{tpu_custom_call.1} parent=43 // pred_check_branch
            %489 = sbr.rel (0) target = $region202
          $region201: #{tpu_custom_call.1} parent=43 // pred_region
            %s491 = ssub.s32 2, 1
            loop: start=0, step=1, limit=1
            $region203: #{tpu_custom_call.1} parent=201 // loop_pre_header
              _
            $region204: #{tpu_custom_call.1} parent=201 // loop_header
              %s493 = sphi 0, %s497
              %p494 = scmp.ge.s32.totalorder %s493, 1
              %s498 = sphi %s483, %s483
              %s499 = sphi %s484, %s484
            $region205: #{tpu_custom_call.1} parent=201 // loop_header_branch
              %496 = sbr.rel (%p494) target = $region209
            $region206: #{tpu_custom_call.1} parent=201 // loop_body
              %v500 = vld [vmem:[%s498] sm:%s491]
              %501 = vst [vmem:[%s499] sm:%s491] %v500
            $region207: #{tpu_custom_call.1} parent=201 // loop_footer
              %s497 = sadd.s32 1, %s493
            $region208: #{tpu_custom_call.1} parent=201 // loop_footer_branch
              %492 = sbr.rel target = $region204
            $region209: #{tpu_custom_call.1} parent=201 // loop_exit
              _
          $region202: #{tpu_custom_call.1} parent=43 // pred_fallthru
            _
          // Predicated region
          $region221: #{tpu_custom_call.1} parent=43 // pred_check
            _
          $region222: #{tpu_custom_call.1} parent=43 // pred_check_branch
            %518 = sbr.rel (0) target = $region224
          $region223: #{tpu_custom_call.1} parent=43 // pred_region
            %519 = vsyncadd %s485, 16
          $region224: #{tpu_custom_call.1} parent=43 // pred_fallthru
            _
          %s520 = sadd.s32 %s288, 6
          %s521 = sld [smem:[#allocation5 + %s520]]
          %s522 = scalar_lea.vmem %s2, %s521
          %s523 = scalar_lea.vmem [#allocation2], 6
          %s524 = scalar_lea.sflag [#allocation3], 6
          // Predicated region
          $region225: #{tpu_custom_call.1} parent=43 // pred_check
            _
          $region226: #{tpu_custom_call.1} parent=43 // pred_check_branch
            %526 = sbr.rel target = $region228
          $region227: #{tpu_custom_call.1} parent=43 // pred_region
            // Predicated region
            $region240: #{tpu_custom_call.1} parent=227 // pred_check
              _
            $region241: #{tpu_custom_call.1} parent=227 // pred_check_branch
              %542 = sbr.rel (0) target = $region243
            $region242: #{tpu_custom_call.1} parent=227 // pred_region
              %s544 = ssub.s32 2, 1
              loop: start=0, step=1, limit=1
              $region244: #{tpu_custom_call.1} parent=242 // loop_pre_header
                _
              $region245: #{tpu_custom_call.1} parent=242 // loop_header
                %s546 = sphi 0, %s550
                %p547 = scmp.ge.s32.totalorder %s546, 1
                %s551 = sphi %s522, %s522
                %s552 = sphi %s523, %s523
              $region246: #{tpu_custom_call.1} parent=242 // loop_header_branch
                %549 = sbr.rel (%p547) target = $region250
              $region247: #{tpu_custom_call.1} parent=242 // loop_body
                %v553 = vld [vmem:[%s551] sm:%s544]
                %554 = vst [vmem:[%s552] sm:%s544] %v553
              $region248: #{tpu_custom_call.1} parent=242 // loop_footer
                %s550 = sadd.s32 1, %s546
              $region249: #{tpu_custom_call.1} parent=242 // loop_footer_branch
                %545 = sbr.rel target = $region245
              $region250: #{tpu_custom_call.1} parent=242 // loop_exit
                _
            $region243: #{tpu_custom_call.1} parent=227 // pred_fallthru
              _
          $region228: #{tpu_custom_call.1} parent=43 // pred_fallthru
            _
          // Predicated region
          $region229: #{tpu_custom_call.1} parent=43 // pred_check
            _
          $region230: #{tpu_custom_call.1} parent=43 // pred_check_branch
            %528 = sbr.rel (0) target = $region232
          $region231: #{tpu_custom_call.1} parent=43 // pred_region
            %s530 = ssub.s32 2, 1
            loop: start=0, step=1, limit=1
            $region233: #{tpu_custom_call.1} parent=231 // loop_pre_header
              _
            $region234: #{tpu_custom_call.1} parent=231 // loop_header
              %s532 = sphi 0, %s536
              %p533 = scmp.ge.s32.totalorder %s532, 1
              %s537 = sphi %s522, %s522
              %s538 = sphi %s523, %s523
            $region235: #{tpu_custom_call.1} parent=231 // loop_header_branch
              %535 = sbr.rel (%p533) target = $region239
            $region236: #{tpu_custom_call.1} parent=231 // loop_body
              %v539 = vld [vmem:[%s537] sm:%s530]
              %540 = vst [vmem:[%s538] sm:%s530] %v539
            $region237: #{tpu_custom_call.1} parent=231 // loop_footer
              %s536 = sadd.s32 1, %s532
            $region238: #{tpu_custom_call.1} parent=231 // loop_footer_branch
              %531 = sbr.rel target = $region234
            $region239: #{tpu_custom_call.1} parent=231 // loop_exit
              _
          $region232: #{tpu_custom_call.1} parent=43 // pred_fallthru
            _
          // Predicated region
          $region251: #{tpu_custom_call.1} parent=43 // pred_check
            _
          $region252: #{tpu_custom_call.1} parent=43 // pred_check_branch
            %557 = sbr.rel (0) target = $region254
          $region253: #{tpu_custom_call.1} parent=43 // pred_region
            %558 = vsyncadd %s524, 16
          $region254: #{tpu_custom_call.1} parent=43 // pred_fallthru
            _
          %s559 = sadd.s32 %s288, 7
          %s560 = sld [smem:[#allocation5 + %s559]]
          %s561 = scalar_lea.vmem %s2, %s560
          %s562 = scalar_lea.vmem [#allocation2], 7
          %s563 = scalar_lea.sflag [#allocation3], 7
          // Predicated region
          $region255: #{tpu_custom_call.1} parent=43 // pred_check
            _
          $region256: #{tpu_custom_call.1} parent=43 // pred_check_branch
            %565 = sbr.rel target = $region258
          $region257: #{tpu_custom_call.1} parent=43 // pred_region
            // Predicated region
            $region270: #{tpu_custom_call.1} parent=257 // pred_check
              _
            $region271: #{tpu_custom_call.1} parent=257 // pred_check_branch
              %581 = sbr.rel (0) target = $region273
            $region272: #{tpu_custom_call.1} parent=257 // pred_region
              %s583 = ssub.s32 2, 1
              loop: start=0, step=1, limit=1
              $region274: #{tpu_custom_call.1} parent=272 // loop_pre_header
                _
              $region275: #{tpu_custom_call.1} parent=272 // loop_header
                %s585 = sphi 0, %s589
                %p586 = scmp.ge.s32.totalorder %s585, 1
                %s590 = sphi %s561, %s561
                %s591 = sphi %s562, %s562
              $region276: #{tpu_custom_call.1} parent=272 // loop_header_branch
                %588 = sbr.rel (%p586) target = $region280
              $region277: #{tpu_custom_call.1} parent=272 // loop_body
                %v592 = vld [vmem:[%s590] sm:%s583]
                %593 = vst [vmem:[%s591] sm:%s583] %v592
              $region278: #{tpu_custom_call.1} parent=272 // loop_footer
                %s589 = sadd.s32 1, %s585
              $region279: #{tpu_custom_call.1} parent=272 // loop_footer_branch
                %584 = sbr.rel target = $region275
              $region280: #{tpu_custom_call.1} parent=272 // loop_exit
                _
            $region273: #{tpu_custom_call.1} parent=257 // pred_fallthru
              _
          $region258: #{tpu_custom_call.1} parent=43 // pred_fallthru
            _
          // Predicated region
          $region259: #{tpu_custom_call.1} parent=43 // pred_check
            _
          $region260: #{tpu_custom_call.1} parent=43 // pred_check_branch
            %567 = sbr.rel (0) target = $region262
          $region261: #{tpu_custom_call.1} parent=43 // pred_region
            %s569 = ssub.s32 2, 1
            loop: start=0, step=1, limit=1
            $region263: #{tpu_custom_call.1} parent=261 // loop_pre_header
              _
            $region264: #{tpu_custom_call.1} parent=261 // loop_header
              %s571 = sphi 0, %s575
              %p572 = scmp.ge.s32.totalorder %s571, 1
              %s576 = sphi %s561, %s561
              %s577 = sphi %s562, %s562
            $region265: #{tpu_custom_call.1} parent=261 // loop_header_branch
              %574 = sbr.rel (%p572) target = $region269
            $region266: #{tpu_custom_call.1} parent=261 // loop_body
              %v578 = vld [vmem:[%s576] sm:%s569]
              %579 = vst [vmem:[%s577] sm:%s569] %v578
            $region267: #{tpu_custom_call.1} parent=261 // loop_footer
              %s575 = sadd.s32 1, %s571
            $region268: #{tpu_custom_call.1} parent=261 // loop_footer_branch
              %570 = sbr.rel target = $region264
            $region269: #{tpu_custom_call.1} parent=261 // loop_exit
              _
          $region262: #{tpu_custom_call.1} parent=43 // pred_fallthru
            _
          // Predicated region
          $region281: #{tpu_custom_call.1} parent=43 // pred_check
            _
          $region282: #{tpu_custom_call.1} parent=43 // pred_check_branch
            %596 = sbr.rel (0) target = $region284
          $region283: #{tpu_custom_call.1} parent=43 // pred_region
            %597 = vsyncadd %s563, 16
          $region284: #{tpu_custom_call.1} parent=43 // pred_fallthru
            _
        $region44: #{tpu_custom_call.1} parent=39 // pred_fallthru
          _
        %s598 = sadd.s32 %s34, 1
        %p599 = scmp.lt.s32.totalorder %s598, 1
        // Predicated region
        $region285: #{tpu_custom_call.1} parent=39 // pred_check
          %p600 = pneg %p599
        $region286: #{tpu_custom_call.1} parent=39 // pred_check_branch
          %602 = sbr.rel (%p600) target = $region288
        $region287: #{tpu_custom_call.1} parent=39 // pred_region
          %s603 = ssub.s32 1, %s283
          %s604 = sadd.s32 %s33, %s598
          %s605 = smul.u32 %s604, 8
          %s606 = smul.u32 %s603, 8
          %s607 = sld [smem:[#allocation5 + %s605]]
          %s608 = scalar_lea.vmem %s2, %s607
          %s609 = scalar_lea.vmem [#allocation2], %s606
          %s610 = scalar_lea.sflag [#allocation3], %s606
          // Predicated region
          $region289: #{tpu_custom_call.1} parent=287 // pred_check
            _
          $region290: #{tpu_custom_call.1} parent=287 // pred_check_branch
            %612 = sbr.rel target = $region292
          $region291: #{tpu_custom_call.1} parent=287 // pred_region
            // Predicated region
            $region304: #{tpu_custom_call.1} parent=291 // pred_check
              _
            $region305: #{tpu_custom_call.1} parent=291 // pred_check_branch
              %628 = sbr.rel (0) target = $region307
            $region306: #{tpu_custom_call.1} parent=291 // pred_region
              %s630 = ssub.s32 2, 1
              loop: start=0, step=1, limit=1
              $region308: #{tpu_custom_call.1} parent=306 // loop_pre_header
                _
              $region309: #{tpu_custom_call.1} parent=306 // loop_header
                %s632 = sphi 0, %s636
                %p633 = scmp.ge.s32.totalorder %s632, 1
                %s637 = sphi %s608, %s608
                %s638 = sphi %s609, %s609
              $region310: #{tpu_custom_call.1} parent=306 // loop_header_branch
                %635 = sbr.rel (%p633) target = $region314
              $region311: #{tpu_custom_call.1} parent=306 // loop_body
                %v639 = vld [vmem:[%s637] sm:%s630]
                %640 = vst [vmem:[%s638] sm:%s630] %v639
              $region312: #{tpu_custom_call.1} parent=306 // loop_footer
                %s636 = sadd.s32 1, %s632
              $region313: #{tpu_custom_call.1} parent=306 // loop_footer_branch
                %631 = sbr.rel target = $region309
              $region314: #{tpu_custom_call.1} parent=306 // loop_exit
                _
            $region307: #{tpu_custom_call.1} parent=291 // pred_fallthru
              _
          $region292: #{tpu_custom_call.1} parent=287 // pred_fallthru
            _
          // Predicated region
          $region293: #{tpu_custom_call.1} parent=287 // pred_check
            _
          $region294: #{tpu_custom_call.1} parent=287 // pred_check_branch
            %614 = sbr.rel (0) target = $region296
          $region295: #{tpu_custom_call.1} parent=287 // pred_region
            %s616 = ssub.s32 2, 1
            loop: start=0, step=1, limit=1
            $region297: #{tpu_custom_call.1} parent=295 // loop_pre_header
              _
            $region298: #{tpu_custom_call.1} parent=295 // loop_header
              %s618 = sphi 0, %s622
              %p619 = scmp.ge.s32.totalorder %s618, 1
              %s623 = sphi %s608, %s608
              %s624 = sphi %s609, %s609
            $region299: #{tpu_custom_call.1} parent=295 // loop_header_branch
              %621 = sbr.rel (%p619) target = $region303
            $region300: #{tpu_custom_call.1} parent=295 // loop_body
              %v625 = vld [vmem:[%s623] sm:%s616]
              %626 = vst [vmem:[%s624] sm:%s616] %v625
            $region301: #{tpu_custom_call.1} parent=295 // loop_footer
              %s622 = sadd.s32 1, %s618
            $region302: #{tpu_custom_call.1} parent=295 // loop_footer_branch
              %617 = sbr.rel target = $region298
            $region303: #{tpu_custom_call.1} parent=295 // loop_exit
              _
          $region296: #{tpu_custom_call.1} parent=287 // pred_fallthru
            _
          // Predicated region
          $region315: #{tpu_custom_call.1} parent=287 // pred_check
            _
          $region316: #{tpu_custom_call.1} parent=287 // pred_check_branch
            %643 = sbr.rel (0) target = $region318
          $region317: #{tpu_custom_call.1} parent=287 // pred_region
            %644 = vsyncadd %s610, 16
          $region318: #{tpu_custom_call.1} parent=287 // pred_fallthru
            _
          %s645 = sadd.s32 %s605, 1
          %s646 = sld [smem:[#allocation5 + %s645]]
          %s647 = sadd.s32 %s606, 1
          %s648 = scalar_lea.vmem %s2, %s646
          %s649 = scalar_lea.vmem [#allocation2], %s647
          %s650 = scalar_lea.sflag [#allocation3], %s647
          // Predicated region
          $region319: #{tpu_custom_call.1} parent=287 // pred_check
            _
          $region320: #{tpu_custom_call.1} parent=287 // pred_check_branch
            %652 = sbr.rel target = $region322
          $region321: #{tpu_custom_call.1} parent=287 // pred_region
            // Predicated region
            $region334: #{tpu_custom_call.1} parent=321 // pred_check
              _
            $region335: #{tpu_custom_call.1} parent=321 // pred_check_branch
              %668 = sbr.rel (0) target = $region337
            $region336: #{tpu_custom_call.1} parent=321 // pred_region
              %s670 = ssub.s32 2, 1
              loop: start=0, step=1, limit=1
              $region338: #{tpu_custom_call.1} parent=336 // loop_pre_header
                _
              $region339: #{tpu_custom_call.1} parent=336 // loop_header
                %s672 = sphi 0, %s676
                %p673 = scmp.ge.s32.totalorder %s672, 1
                %s677 = sphi %s648, %s648
                %s678 = sphi %s649, %s649
              $region340: #{tpu_custom_call.1} parent=336 // loop_header_branch
                %675 = sbr.rel (%p673) target = $region344
              $region341: #{tpu_custom_call.1} parent=336 // loop_body
                %v679 = vld [vmem:[%s677] sm:%s670]
                %680 = vst [vmem:[%s678] sm:%s670] %v679
              $region342: #{tpu_custom_call.1} parent=336 // loop_footer
                %s676 = sadd.s32 1, %s672
              $region343: #{tpu_custom_call.1} parent=336 // loop_footer_branch
                %671 = sbr.rel target = $region339
              $region344: #{tpu_custom_call.1} parent=336 // loop_exit
                _
            $region337: #{tpu_custom_call.1} parent=321 // pred_fallthru
              _
          $region322: #{tpu_custom_call.1} parent=287 // pred_fallthru
            _
          // Predicated region
          $region323: #{tpu_custom_call.1} parent=287 // pred_check
            _
          $region324: #{tpu_custom_call.1} parent=287 // pred_check_branch
            %654 = sbr.rel (0) target = $region326
          $region325: #{tpu_custom_call.1} parent=287 // pred_region
            %s656 = ssub.s32 2, 1
            loop: start=0, step=1, limit=1
            $region327: #{tpu_custom_call.1} parent=325 // loop_pre_header
              _
            $region328: #{tpu_custom_call.1} parent=325 // loop_header
              %s658 = sphi 0, %s662
              %p659 = scmp.ge.s32.totalorder %s658, 1
              %s663 = sphi %s648, %s648
              %s664 = sphi %s649, %s649
            $region329: #{tpu_custom_call.1} parent=325 // loop_header_branch
              %661 = sbr.rel (%p659) target = $region333
            $region330: #{tpu_custom_call.1} parent=325 // loop_body
              %v665 = vld [vmem:[%s663] sm:%s656]
              %666 = vst [vmem:[%s664] sm:%s656] %v665
            $region331: #{tpu_custom_call.1} parent=325 // loop_footer
              %s662 = sadd.s32 1, %s658
            $region332: #{tpu_custom_call.1} parent=325 // loop_footer_branch
              %657 = sbr.rel target = $region328
            $region333: #{tpu_custom_call.1} parent=325 // loop_exit
              _
          $region326: #{tpu_custom_call.1} parent=287 // pred_fallthru
            _
          // Predicated region
          $region345: #{tpu_custom_call.1} parent=287 // pred_check
            _
          $region346: #{tpu_custom_call.1} parent=287 // pred_check_branch
            %683 = sbr.rel (0) target = $region348
          $region347: #{tpu_custom_call.1} parent=287 // pred_region
            %684 = vsyncadd %s650, 16
          $region348: #{tpu_custom_call.1} parent=287 // pred_fallthru
            _
          %s685 = sadd.s32 %s605, 2
          %s686 = sld [smem:[#allocation5 + %s685]]
          %s687 = sadd.s32 %s606, 2
          %s688 = scalar_lea.vmem %s2, %s686
          %s689 = scalar_lea.vmem [#allocation2], %s687
          %s690 = scalar_lea.sflag [#allocation3], %s687
          // Predicated region
          $region349: #{tpu_custom_call.1} parent=287 // pred_check
            _
          $region350: #{tpu_custom_call.1} parent=287 // pred_check_branch
            %692 = sbr.rel target = $region352
          $region351: #{tpu_custom_call.1} parent=287 // pred_region
            // Predicated region
            $region364: #{tpu_custom_call.1} parent=351 // pred_check
              _
            $region365: #{tpu_custom_call.1} parent=351 // pred_check_branch
              %708 = sbr.rel (0) target = $region367
            $region366: #{tpu_custom_call.1} parent=351 // pred_region
              %s710 = ssub.s32 2, 1
              loop: start=0, step=1, limit=1
              $region368: #{tpu_custom_call.1} parent=366 // loop_pre_header
                _
              $region369: #{tpu_custom_call.1} parent=366 // loop_header
                %s712 = sphi 0, %s716
                %p713 = scmp.ge.s32.totalorder %s712, 1
                %s717 = sphi %s688, %s688
                %s718 = sphi %s689, %s689
              $region370: #{tpu_custom_call.1} parent=366 // loop_header_branch
                %715 = sbr.rel (%p713) target = $region374
              $region371: #{tpu_custom_call.1} parent=366 // loop_body
                %v719 = vld [vmem:[%s717] sm:%s710]
                %720 = vst [vmem:[%s718] sm:%s710] %v719
              $region372: #{tpu_custom_call.1} parent=366 // loop_footer
                %s716 = sadd.s32 1, %s712
              $region373: #{tpu_custom_call.1} parent=366 // loop_footer_branch
                %711 = sbr.rel target = $region369
              $region374: #{tpu_custom_call.1} parent=366 // loop_exit
                _
            $region367: #{tpu_custom_call.1} parent=351 // pred_fallthru
              _
          $region352: #{tpu_custom_call.1} parent=287 // pred_fallthru
            _
          // Predicated region
          $region353: #{tpu_custom_call.1} parent=287 // pred_check
            _
          $region354: #{tpu_custom_call.1} parent=287 // pred_check_branch
            %694 = sbr.rel (0) target = $region356
          $region355: #{tpu_custom_call.1} parent=287 // pred_region
            %s696 = ssub.s32 2, 1
            loop: start=0, step=1, limit=1
            $region357: #{tpu_custom_call.1} parent=355 // loop_pre_header
              _
            $region358: #{tpu_custom_call.1} parent=355 // loop_header
              %s698 = sphi 0, %s702
              %p699 = scmp.ge.s32.totalorder %s698, 1
              %s703 = sphi %s688, %s688
              %s704 = sphi %s689, %s689
            $region359: #{tpu_custom_call.1} parent=355 // loop_header_branch
              %701 = sbr.rel (%p699) target = $region363
            $region360: #{tpu_custom_call.1} parent=355 // loop_body
              %v705 = vld [vmem:[%s703] sm:%s696]
              %706 = vst [vmem:[%s704] sm:%s696] %v705
            $region361: #{tpu_custom_call.1} parent=355 // loop_footer
              %s702 = sadd.s32 1, %s698
            $region362: #{tpu_custom_call.1} parent=355 // loop_footer_branch
              %697 = sbr.rel target = $region358
            $region363: #{tpu_custom_call.1} parent=355 // loop_exit
              _
          $region356: #{tpu_custom_call.1} parent=287 // pred_fallthru
            _
          // Predicated region
          $region375: #{tpu_custom_call.1} parent=287 // pred_check
            _
          $region376: #{tpu_custom_call.1} parent=287 // pred_check_branch
            %723 = sbr.rel (0) target = $region378
          $region377: #{tpu_custom_call.1} parent=287 // pred_region
            %724 = vsyncadd %s690, 16
          $region378: #{tpu_custom_call.1} parent=287 // pred_fallthru
            _
          %s725 = sadd.s32 %s605, 3
          %s726 = sld [smem:[#allocation5 + %s725]]
          %s727 = sadd.s32 %s606, 3
          %s728 = scalar_lea.vmem %s2, %s726
          %s729 = scalar_lea.vmem [#allocation2], %s727
          %s730 = scalar_lea.sflag [#allocation3], %s727
          // Predicated region
          $region379: #{tpu_custom_call.1} parent=287 // pred_check
            _
          $region380: #{tpu_custom_call.1} parent=287 // pred_check_branch
            %732 = sbr.rel target = $region382
          $region381: #{tpu_custom_call.1} parent=287 // pred_region
            // Predicated region
            $region394: #{tpu_custom_call.1} parent=381 // pred_check
              _
            $region395: #{tpu_custom_call.1} parent=381 // pred_check_branch
              %748 = sbr.rel (0) target = $region397
            $region396: #{tpu_custom_call.1} parent=381 // pred_region
              %s750 = ssub.s32 2, 1
              loop: start=0, step=1, limit=1
              $region398: #{tpu_custom_call.1} parent=396 // loop_pre_header
                _
              $region399: #{tpu_custom_call.1} parent=396 // loop_header
                %s752 = sphi 0, %s756
                %p753 = scmp.ge.s32.totalorder %s752, 1
                %s757 = sphi %s728, %s728
                %s758 = sphi %s729, %s729
              $region400: #{tpu_custom_call.1} parent=396 // loop_header_branch
                %755 = sbr.rel (%p753) target = $region404
              $region401: #{tpu_custom_call.1} parent=396 // loop_body
                %v759 = vld [vmem:[%s757] sm:%s750]
                %760 = vst [vmem:[%s758] sm:%s750] %v759
              $region402: #{tpu_custom_call.1} parent=396 // loop_footer
                %s756 = sadd.s32 1, %s752
              $region403: #{tpu_custom_call.1} parent=396 // loop_footer_branch
                %751 = sbr.rel target = $region399
              $region404: #{tpu_custom_call.1} parent=396 // loop_exit
                _
            $region397: #{tpu_custom_call.1} parent=381 // pred_fallthru
              _
          $region382: #{tpu_custom_call.1} parent=287 // pred_fallthru
            _
          // Predicated region
          $region383: #{tpu_custom_call.1} parent=287 // pred_check
            _
          $region384: #{tpu_custom_call.1} parent=287 // pred_check_branch
            %734 = sbr.rel (0) target = $region386
          $region385: #{tpu_custom_call.1} parent=287 // pred_region
            %s736 = ssub.s32 2, 1
            loop: start=0, step=1, limit=1
            $region387: #{tpu_custom_call.1} parent=385 // loop_pre_header
              _
            $region388: #{tpu_custom_call.1} parent=385 // loop_header
              %s738 = sphi 0, %s742
              %p739 = scmp.ge.s32.totalorder %s738, 1
              %s743 = sphi %s728, %s728
              %s744 = sphi %s729, %s729
            $region389: #{tpu_custom_call.1} parent=385 // loop_header_branch
              %741 = sbr.rel (%p739) target = $region393
            $region390: #{tpu_custom_call.1} parent=385 // loop_body
              %v745 = vld [vmem:[%s743] sm:%s736]
              %746 = vst [vmem:[%s744] sm:%s736] %v745
            $region391: #{tpu_custom_call.1} parent=385 // loop_footer
              %s742 = sadd.s32 1, %s738
            $region392: #{tpu_custom_call.1} parent=385 // loop_footer_branch
              %737 = sbr.rel target = $region388
            $region393: #{tpu_custom_call.1} parent=385 // loop_exit
              _
          $region386: #{tpu_custom_call.1} parent=287 // pred_fallthru
            _
          // Predicated region
          $region405: #{tpu_custom_call.1} parent=287 // pred_check
            _
          $region406: #{tpu_custom_call.1} parent=287 // pred_check_branch
            %763 = sbr.rel (0) target = $region408
          $region407: #{tpu_custom_call.1} parent=287 // pred_region
            %764 = vsyncadd %s730, 16
          $region408: #{tpu_custom_call.1} parent=287 // pred_fallthru
            _
          %s765 = sadd.s32 %s605, 4
          %s766 = sld [smem:[#allocation5 + %s765]]
          %s767 = sadd.s32 %s606, 4
          %s768 = scalar_lea.vmem %s2, %s766
          %s769 = scalar_lea.vmem [#allocation2], %s767
          %s770 = scalar_lea.sflag [#allocation3], %s767
          // Predicated region
          $region409: #{tpu_custom_call.1} parent=287 // pred_check
            _
          $region410: #{tpu_custom_call.1} parent=287 // pred_check_branch
            %772 = sbr.rel target = $region412
          $region411: #{tpu_custom_call.1} parent=287 // pred_region
            // Predicated region
            $region424: #{tpu_custom_call.1} parent=411 // pred_check
              _
            $region425: #{tpu_custom_call.1} parent=411 // pred_check_branch
              %788 = sbr.rel (0) target = $region427
            $region426: #{tpu_custom_call.1} parent=411 // pred_region
              %s790 = ssub.s32 2, 1
              loop: start=0, step=1, limit=1
              $region428: #{tpu_custom_call.1} parent=426 // loop_pre_header
                _
              $region429: #{tpu_custom_call.1} parent=426 // loop_header
                %s792 = sphi 0, %s796
                %p793 = scmp.ge.s32.totalorder %s792, 1
                %s797 = sphi %s768, %s768
                %s798 = sphi %s769, %s769
              $region430: #{tpu_custom_call.1} parent=426 // loop_header_branch
                %795 = sbr.rel (%p793) target = $region434
              $region431: #{tpu_custom_call.1} parent=426 // loop_body
                %v799 = vld [vmem:[%s797] sm:%s790]
                %800 = vst [vmem:[%s798] sm:%s790] %v799
              $region432: #{tpu_custom_call.1} parent=426 // loop_footer
                %s796 = sadd.s32 1, %s792
              $region433: #{tpu_custom_call.1} parent=426 // loop_footer_branch
                %791 = sbr.rel target = $region429
              $region434: #{tpu_custom_call.1} parent=426 // loop_exit
                _
            $region427: #{tpu_custom_call.1} parent=411 // pred_fallthru
              _
          $region412: #{tpu_custom_call.1} parent=287 // pred_fallthru
            _
          // Predicated region
          $region413: #{tpu_custom_call.1} parent=287 // pred_check
            _
          $region414: #{tpu_custom_call.1} parent=287 // pred_check_branch
            %774 = sbr.rel (0) target = $region416
          $region415: #{tpu_custom_call.1} parent=287 // pred_region
            %s776 = ssub.s32 2, 1
            loop: start=0, step=1, limit=1
            $region417: #{tpu_custom_call.1} parent=415 // loop_pre_header
              _
            $region418: #{tpu_custom_call.1} parent=415 // loop_header
              %s778 = sphi 0, %s782
              %p779 = scmp.ge.s32.totalorder %s778, 1
              %s783 = sphi %s768, %s768
              %s784 = sphi %s769, %s769
            $region419: #{tpu_custom_call.1} parent=415 // loop_header_branch
              %781 = sbr.rel (%p779) target = $region423
            $region420: #{tpu_custom_call.1} parent=415 // loop_body
              %v785 = vld [vmem:[%s783] sm:%s776]
              %786 = vst [vmem:[%s784] sm:%s776] %v785
            $region421: #{tpu_custom_call.1} parent=415 // loop_footer
              %s782 = sadd.s32 1, %s778
            $region422: #{tpu_custom_call.1} parent=415 // loop_footer_branch
              %777 = sbr.rel target = $region418
            $region423: #{tpu_custom_call.1} parent=415 // loop_exit
              _
          $region416: #{tpu_custom_call.1} parent=287 // pred_fallthru
            _
          // Predicated region
          $region435: #{tpu_custom_call.1} parent=287 // pred_check
            _
          $region436: #{tpu_custom_call.1} parent=287 // pred_check_branch
            %803 = sbr.rel (0) target = $region438
          $region437: #{tpu_custom_call.1} parent=287 // pred_region
            %804 = vsyncadd %s770, 16
          $region438: #{tpu_custom_call.1} parent=287 // pred_fallthru
            _
          %s805 = sadd.s32 %s605, 5
          %s806 = sld [smem:[#allocation5 + %s805]]
          %s807 = sadd.s32 %s606, 5
          %s808 = scalar_lea.vmem %s2, %s806
          %s809 = scalar_lea.vmem [#allocation2], %s807
          %s810 = scalar_lea.sflag [#allocation3], %s807
          // Predicated region
          $region439: #{tpu_custom_call.1} parent=287 // pred_check
            _
          $region440: #{tpu_custom_call.1} parent=287 // pred_check_branch
            %812 = sbr.rel target = $region442
          $region441: #{tpu_custom_call.1} parent=287 // pred_region
            // Predicated region
            $region454: #{tpu_custom_call.1} parent=441 // pred_check
              _
            $region455: #{tpu_custom_call.1} parent=441 // pred_check_branch
              %828 = sbr.rel (0) target = $region457
            $region456: #{tpu_custom_call.1} parent=441 // pred_region
              %s830 = ssub.s32 2, 1
              loop: start=0, step=1, limit=1
              $region458: #{tpu_custom_call.1} parent=456 // loop_pre_header
                _
              $region459: #{tpu_custom_call.1} parent=456 // loop_header
                %s832 = sphi 0, %s836
                %p833 = scmp.ge.s32.totalorder %s832, 1
                %s837 = sphi %s808, %s808
                %s838 = sphi %s809, %s809
              $region460: #{tpu_custom_call.1} parent=456 // loop_header_branch
                %835 = sbr.rel (%p833) target = $region464
              $region461: #{tpu_custom_call.1} parent=456 // loop_body
                %v839 = vld [vmem:[%s837] sm:%s830]
                %840 = vst [vmem:[%s838] sm:%s830] %v839
              $region462: #{tpu_custom_call.1} parent=456 // loop_footer
                %s836 = sadd.s32 1, %s832
              $region463: #{tpu_custom_call.1} parent=456 // loop_footer_branch
                %831 = sbr.rel target = $region459
              $region464: #{tpu_custom_call.1} parent=456 // loop_exit
                _
            $region457: #{tpu_custom_call.1} parent=441 // pred_fallthru
              _
          $region442: #{tpu_custom_call.1} parent=287 // pred_fallthru
            _
          // Predicated region
          $region443: #{tpu_custom_call.1} parent=287 // pred_check
            _
          $region444: #{tpu_custom_call.1} parent=287 // pred_check_branch
            %814 = sbr.rel (0) target = $region446
          $region445: #{tpu_custom_call.1} parent=287 // pred_region
            %s816 = ssub.s32 2, 1
            loop: start=0, step=1, limit=1
            $region447: #{tpu_custom_call.1} parent=445 // loop_pre_header
              _
            $region448: #{tpu_custom_call.1} parent=445 // loop_header
              %s818 = sphi 0, %s822
              %p819 = scmp.ge.s32.totalorder %s818, 1
              %s823 = sphi %s808, %s808
              %s824 = sphi %s809, %s809
            $region449: #{tpu_custom_call.1} parent=445 // loop_header_branch
              %821 = sbr.rel (%p819) target = $region453
            $region450: #{tpu_custom_call.1} parent=445 // loop_body
              %v825 = vld [vmem:[%s823] sm:%s816]
              %826 = vst [vmem:[%s824] sm:%s816] %v825
            $region451: #{tpu_custom_call.1} parent=445 // loop_footer
              %s822 = sadd.s32 1, %s818
            $region452: #{tpu_custom_call.1} parent=445 // loop_footer_branch
              %817 = sbr.rel target = $region448
            $region453: #{tpu_custom_call.1} parent=445 // loop_exit
              _
          $region446: #{tpu_custom_call.1} parent=287 // pred_fallthru
            _
          // Predicated region
          $region465: #{tpu_custom_call.1} parent=287 // pred_check
            _
          $region466: #{tpu_custom_call.1} parent=287 // pred_check_branch
            %843 = sbr.rel (0) target = $region468
          $region467: #{tpu_custom_call.1} parent=287 // pred_region
            %844 = vsyncadd %s810, 16
          $region468: #{tpu_custom_call.1} parent=287 // pred_fallthru
            _
          %s845 = sadd.s32 %s605, 6
          %s846 = sld [smem:[#allocation5 + %s845]]
          %s847 = sadd.s32 %s606, 6
          %s848 = scalar_lea.vmem %s2, %s846
          %s849 = scalar_lea.vmem [#allocation2], %s847
          %s850 = scalar_lea.sflag [#allocation3], %s847
          // Predicated region
          $region469: #{tpu_custom_call.1} parent=287 // pred_check
            _
          $region470: #{tpu_custom_call.1} parent=287 // pred_check_branch
            %852 = sbr.rel target = $region472
          $region471: #{tpu_custom_call.1} parent=287 // pred_region
            // Predicated region
            $region484: #{tpu_custom_call.1} parent=471 // pred_check
              _
            $region485: #{tpu_custom_call.1} parent=471 // pred_check_branch
              %868 = sbr.rel (0) target = $region487
            $region486: #{tpu_custom_call.1} parent=471 // pred_region
              %s870 = ssub.s32 2, 1
              loop: start=0, step=1, limit=1
              $region488: #{tpu_custom_call.1} parent=486 // loop_pre_header
                _
              $region489: #{tpu_custom_call.1} parent=486 // loop_header
                %s872 = sphi 0, %s876
                %p873 = scmp.ge.s32.totalorder %s872, 1
                %s877 = sphi %s848, %s848
                %s878 = sphi %s849, %s849
              $region490: #{tpu_custom_call.1} parent=486 // loop_header_branch
                %875 = sbr.rel (%p873) target = $region494
              $region491: #{tpu_custom_call.1} parent=486 // loop_body
                %v879 = vld [vmem:[%s877] sm:%s870]
                %880 = vst [vmem:[%s878] sm:%s870] %v879
              $region492: #{tpu_custom_call.1} parent=486 // loop_footer
                %s876 = sadd.s32 1, %s872
              $region493: #{tpu_custom_call.1} parent=486 // loop_footer_branch
                %871 = sbr.rel target = $region489
              $region494: #{tpu_custom_call.1} parent=486 // loop_exit
                _
            $region487: #{tpu_custom_call.1} parent=471 // pred_fallthru
              _
          $region472: #{tpu_custom_call.1} parent=287 // pred_fallthru
            _
          // Predicated region
          $region473: #{tpu_custom_call.1} parent=287 // pred_check
            _
          $region474: #{tpu_custom_call.1} parent=287 // pred_check_branch
            %854 = sbr.rel (0) target = $region476
          $region475: #{tpu_custom_call.1} parent=287 // pred_region
            %s856 = ssub.s32 2, 1
            loop: start=0, step=1, limit=1
            $region477: #{tpu_custom_call.1} parent=475 // loop_pre_header
              _
            $region478: #{tpu_custom_call.1} parent=475 // loop_header
              %s858 = sphi 0, %s862
              %p859 = scmp.ge.s32.totalorder %s858, 1
              %s863 = sphi %s848, %s848
              %s864 = sphi %s849, %s849
            $region479: #{tpu_custom_call.1} parent=475 // loop_header_branch
              %861 = sbr.rel (%p859) target = $region483
            $region480: #{tpu_custom_call.1} parent=475 // loop_body
              %v865 = vld [vmem:[%s863] sm:%s856]
              %866 = vst [vmem:[%s864] sm:%s856] %v865
            $region481: #{tpu_custom_call.1} parent=475 // loop_footer
              %s862 = sadd.s32 1, %s858
            $region482: #{tpu_custom_call.1} parent=475 // loop_footer_branch
              %857 = sbr.rel target = $region478
            $region483: #{tpu_custom_call.1} parent=475 // loop_exit
              _
          $region476: #{tpu_custom_call.1} parent=287 // pred_fallthru
            _
          // Predicated region
          $region495: #{tpu_custom_call.1} parent=287 // pred_check
            _
          $region496: #{tpu_custom_call.1} parent=287 // pred_check_branch
            %883 = sbr.rel (0) target = $region498
          $region497: #{tpu_custom_call.1} parent=287 // pred_region
            %884 = vsyncadd %s850, 16
          $region498: #{tpu_custom_call.1} parent=287 // pred_fallthru
            _
          %s885 = sadd.s32 %s605, 7
          %s886 = sld [smem:[#allocation5 + %s885]]
          %s887 = sadd.s32 %s606, 7
          %s888 = scalar_lea.vmem %s2, %s886
          %s889 = scalar_lea.vmem [#allocation2], %s887
          %s890 = scalar_lea.sflag [#allocation3], %s887
          // Predicated region
          $region499: #{tpu_custom_call.1} parent=287 // pred_check
            _
          $region500: #{tpu_custom_call.1} parent=287 // pred_check_branch
            %892 = sbr.rel target = $region502
          $region501: #{tpu_custom_call.1} parent=287 // pred_region
            // Predicated region
            $region514: #{tpu_custom_call.1} parent=501 // pred_check
              _
            $region515: #{tpu_custom_call.1} parent=501 // pred_check_branch
              %908 = sbr.rel (0) target = $region517
            $region516: #{tpu_custom_call.1} parent=501 // pred_region
              %s910 = ssub.s32 2, 1
              loop: start=0, step=1, limit=1
              $region518: #{tpu_custom_call.1} parent=516 // loop_pre_header
                _
              $region519: #{tpu_custom_call.1} parent=516 // loop_header
                %s912 = sphi 0, %s916
                %p913 = scmp.ge.s32.totalorder %s912, 1
                %s917 = sphi %s888, %s888
                %s918 = sphi %s889, %s889
              $region520: #{tpu_custom_call.1} parent=516 // loop_header_branch
                %915 = sbr.rel (%p913) target = $region524
              $region521: #{tpu_custom_call.1} parent=516 // loop_body
                %v919 = vld [vmem:[%s917] sm:%s910]
                %920 = vst [vmem:[%s918] sm:%s910] %v919
              $region522: #{tpu_custom_call.1} parent=516 // loop_footer
                %s916 = sadd.s32 1, %s912
              $region523: #{tpu_custom_call.1} parent=516 // loop_footer_branch
                %911 = sbr.rel target = $region519
              $region524: #{tpu_custom_call.1} parent=516 // loop_exit
                _
            $region517: #{tpu_custom_call.1} parent=501 // pred_fallthru
              _
          $region502: #{tpu_custom_call.1} parent=287 // pred_fallthru
            _
          // Predicated region
          $region503: #{tpu_custom_call.1} parent=287 // pred_check
            _
          $region504: #{tpu_custom_call.1} parent=287 // pred_check_branch
            %894 = sbr.rel (0) target = $region506
          $region505: #{tpu_custom_call.1} parent=287 // pred_region
            %s896 = ssub.s32 2, 1
            loop: start=0, step=1, limit=1
            $region507: #{tpu_custom_call.1} parent=505 // loop_pre_header
              _
            $region508: #{tpu_custom_call.1} parent=505 // loop_header
              %s898 = sphi 0, %s902
              %p899 = scmp.ge.s32.totalorder %s898, 1
              %s903 = sphi %s888, %s888
              %s904 = sphi %s889, %s889
            $region509: #{tpu_custom_call.1} parent=505 // loop_header_branch
              %901 = sbr.rel (%p899) target = $region513
            $region510: #{tpu_custom_call.1} parent=505 // loop_body
              %v905 = vld [vmem:[%s903] sm:%s896]
              %906 = vst [vmem:[%s904] sm:%s896] %v905
            $region511: #{tpu_custom_call.1} parent=505 // loop_footer
              %s902 = sadd.s32 1, %s898
            $region512: #{tpu_custom_call.1} parent=505 // loop_footer_branch
              %897 = sbr.rel target = $region508
            $region513: #{tpu_custom_call.1} parent=505 // loop_exit
              _
          $region506: #{tpu_custom_call.1} parent=287 // pred_fallthru
            _
          // Predicated region
          $region525: #{tpu_custom_call.1} parent=287 // pred_check
            _
          $region526: #{tpu_custom_call.1} parent=287 // pred_check_branch
            %923 = sbr.rel (0) target = $region528
          $region527: #{tpu_custom_call.1} parent=287 // pred_region
            %924 = vsyncadd %s890, 16
          $region528: #{tpu_custom_call.1} parent=287 // pred_fallthru
            _
        $region288: #{tpu_custom_call.1} parent=39 // pred_fallthru
          _
        %s925 = smul.u32 %s283, 8
        %s926 = scalar_lea.sflag [#allocation3], %s925
        %s927 = smul.u32 1, 1
        %s928 = sshll.u32 %s927, 4
        %929 = dma.done %s926, %s928
        %s930 = sadd.s32 %s925, 1
        %s931 = scalar_lea.sflag [#allocation3], %s930
        %s932 = sshll.u32 %s927, 4
        %933 = dma.done %s931, %s932
        %s934 = sadd.s32 %s925, 2
        %s935 = scalar_lea.sflag [#allocation3], %s934
        %s936 = sshll.u32 %s927, 4
        %937 = dma.done %s935, %s936
        %s938 = sadd.s32 %s925, 3
        %s939 = scalar_lea.sflag [#allocation3], %s938
        %s940 = sshll.u32 %s927, 4
        %941 = dma.done %s939, %s940
        %s942 = sadd.s32 %s925, 4
        %s943 = scalar_lea.sflag [#allocation3], %s942
        %s944 = sshll.u32 %s927, 4
        %945 = dma.done %s943, %s944
        %s946 = sadd.s32 %s925, 5
        %s947 = scalar_lea.sflag [#allocation3], %s946
        %s948 = sshll.u32 %s927, 4
        %949 = dma.done %s947, %s948
        %s950 = sadd.s32 %s925, 6
        %s951 = scalar_lea.sflag [#allocation3], %s950
        %s952 = sshll.u32 %s927, 4
        %953 = dma.done %s951, %s952
        %s954 = sadd.s32 %s925, 7
        %s955 = scalar_lea.sflag [#allocation3], %s954
        %s956 = sshll.u32 %s927, 4
        %957 = dma.done %s955, %s956
        %s958 = scalar_lea.vmem [#allocation2], %s925
        %v959 = vld [vmem:[%s958] sm:$0xff]
        %v960 = vld [vmem:[%s271] sm:$0xff]
        %v961 = vld [vmem:[%s267] sm:$0xff]
        %v962 = vld [vmem:[%s4] sm:$0x3]
        %vm963 = vcmp.eq.s32.totalorder %v961, 0
        %v964 = vsel %vm963, 1, 0
        %v965 = vcvt.s32.f32 %v964
        %967 = vset.pattern.permute.xlu0 0
        %968 = vperm.xlu0 %967, %v965
        %v969 = vpop.permute.xlu0 %968
        %v971 = vperm.slane %v962, 0
        %v972 = vmul.f32 %v969, %v971
        %v973 = vadd.f32 %v972, 0.0
        %vm974 = vcmp.eq.s32.totalorder %v961, 1
        %v975 = vsel %vm974, 1, 0
        %v976 = vcvt.s32.f32 %v975
        %978 = vset.pattern.permute.xlu0 0
        %979 = vperm.xlu0 %978, %v976
        %v980 = vpop.permute.xlu0 %979
        %v982 = vperm.slane %v962, 1
        %v983 = vmul.f32 %v980, %v982
        %v984 = vadd.f32 %v973, %v983
        %v985 = vadd.f32 %v959, %v960
        %v986 = vadd.f32 %v985, %v984
        %vm987 = vcmask 261120
        %v988 = vsel %vm987, %v986, 0.0
        %989 = vadd.xlane.f32.xlu0 %v988
        %v990 = vpop.xlane.xlu0 %989
        %v991 = vrcp.pop 32.0
        %v992 = vmul.f32 32.0, %v991
        %v993 = vsub.f32 1.0, %v992
        %v994 = vmul.f32 %v991, %v993
        %v995 = vadd.f32 %v991, %v994
        %vm996 = vweird.f32 %v991
        %v997 = vsel %vm996, %v991, %v995
        %v998 = vmul.f32 %v990, %v997
        %v999 = vmul.f32 %v986, %v986
        %v1000 = vsel %vm987, %v999, 0.0
        %1001 = vadd.xlane.f32.xlu0 %v1000
        %v1002 = vpop.xlane.xlu0 %1001
        %v1003 = vmul.f32 %v1002, %v997
        %v1004 = vmul.f32 %v998, %v998
        %v1005 = vsub.f32 %v1003, %v1004
        %v1006 = vsub.f32 %v986, %v998
        %v1007 = vadd.f32 %v1005, 1e-12
        %v1008 = vrsqrt.pop %v1007
        %v1009 = vmul.f32 %v1008, %v1007
        %v1010 = vmul.f32 %v1009, %v1008
        %v1011 = vmul.f32 0.5, %v1010
        %v1012 = vsub.f32 1.5, %v1011
        %v1013 = vmul.f32 %v1008, %v1012
        %vm1014 = vweird.f32 %v1007
        %vm1015 = vweird.f32 %v1008
        %vm1016 = vmor %vm1014, %vm1015
        %v1017 = vsel %vm1016, %v1008, %v1013
        %v1018 = vmul.f32 %v1006, %v1017
        %v1019 = vld [vmem:[%s5] sm:$0x1]
        %v1021 = vperm.slane %v1019, 0
        %v1023 = vmul.f32 %v1021, %v1018
        %v1024 = vld [vmem:[%s6] sm:$0x1]
        %v1026 = vperm.slane %v1024, 0
        %v1028 = vadd.f32 %v1023, %v1026
        %1029 = vst.msk [vmem:[%s260] sm:$0xff] %vm987, %v1028
        %s1030 = sand.u32 %s168, 1
        %s1031 = scalar_lea.sflag [#allocation7], %s1030
        %s1032 = sand.u32 %s168, 1
        %s1033 = smul.addr %s1032, 8
        %s1034 = scalar_lea.vmem [#allocation6], %s1033
        // Predicated region
        $region529: #{tpu_custom_call.1} parent=39 // pred_check
          %p1035 = pneg %p178
        $region530: #{tpu_custom_call.1} parent=39 // pred_check_branch
          %1037 = sbr.rel (%p1035) target = $region532
        $region531: #{tpu_custom_call.1} parent=39 // pred_region
          %1039 = vsyncadd %s1031, 0
          %s1040 = sadd.s32 %s34, %s33
          %s1041 = smul.addr %s1040, 8
          %s1042 = scalar_lea.hbm %s7, %s1041
          %s1044 = sshll.u32 %s1034, 4
          %s1045 = int_to_ptr.vmem [resolvable:$true] %s1044
          %s1046 = sshll.u32 %s1042, 4
          %s1047 = int_to_ptr.hbm [resolvable:$true] %s1046
          %1049 = dma.vmem_to_hbm [thread:$0]  %s1045, 128, %s1047, %s1031
        $region532: #{tpu_custom_call.1} parent=39 // pred_fallthru
          _
      $region40: #{tpu_custom_call.1} parent=5 // pred_fallthru
        _
      %p1050 = scmp.le.s32.totalorder 2, %s24
      // Predicated region
      $region533: #{tpu_custom_call.1} parent=5 // pred_check
        %p1051 = pneg %p1050
      $region534: #{tpu_custom_call.1} parent=5 // pred_check_branch
        %1053 = sbr.rel (%p1051) target = $region536
      $region535: #{tpu_custom_call.1} parent=5 // pred_region
        %s1054 = ssub.s32 %s24, 2
        // Predicated region
        $region537: #{tpu_custom_call.1} parent=535 // pred_check
          %p1055 = pneg %p184
        $region538: #{tpu_custom_call.1} parent=535 // pred_check_branch
          %1057 = sbr.rel (%p1055) target = $region540
        $region539: #{tpu_custom_call.1} parent=535 // pred_region
          %s1058 = sand.u32 %s169, 1
          %s1059 = scalar_lea.sflag [#allocation7], %s1058
          %s1060 = sand.u32 %s169, 1
          %s1061 = smul.addr %s1060, 8
          %s1062 = scalar_lea.vmem [#allocation6], %s1061
          %1064 = dma.done %s1059, 128
        $region540: #{tpu_custom_call.1} parent=535 // pred_fallthru
          _
      $region536: #{tpu_custom_call.1} parent=5 // pred_fallthru
        _
    $region6: #{tpu_custom_call.1} parent=1 // loop_footer
      %s28 = sadd.s32 1, %s24
    $region7: #{tpu_custom_call.1} parent=1 // loop_footer_branch
      %23 = sbr.rel target = $region3
    $region8: #{tpu_custom_call.1} parent=1 // loop_exit
      _
    %1065 = vsyncpa [#allocation7], 1
    %s1066 = scalar_lea.sflag [#allocation7], 1
    %1067 = vsyncpa %s1066, 1
  %1068 = vsyncmov [#allocation3]
  %s1069 = vpop.sfrf %1068
  %p1070 = scmp.eq.s32.totalorder %s1069, 0
  %p1071 = pneg %p1070
  %1073 = shalt.err (%p1071)
  %s1074 = scalar_lea.sflag [#allocation3], 1
  %1075 = vsyncmov %s1074
  %s1076 = vpop.sfrf %1075
  %p1077 = scmp.eq.s32.totalorder %s1076, 0
  %p1078 = pneg %p1077
  %1080 = shalt.err (%p1078)
  %s1081 = scalar_lea.sflag [#allocation3], 2
  %1082 = vsyncmov %s1081
  %s1083 = vpop.sfrf %1082
  %p1084 = scmp.eq.s32.totalorder %s1083, 0
  %p1085 = pneg %p1084
  %1087 = shalt.err (%p1085)
  %s1088 = scalar_lea.sflag [#allocation3], 3
  %1089 = vsyncmov %s1088
  %s1090 = vpop.sfrf %1089
  %p1091 = scmp.eq.s32.totalorder %s1090, 0
  %p1092 = pneg %p1091
  %1094 = shalt.err (%p1092)
  %s1095 = scalar_lea.sflag [#allocation3], 4
  %1096 = vsyncmov %s1095
  %s1097 = vpop.sfrf %1096
  %p1098 = scmp.eq.s32.totalorder %s1097, 0
  %p1099 = pneg %p1098
  %1101 = shalt.err (%p1099)
  %s1102 = scalar_lea.sflag [#allocation3], 5
  %1103 = vsyncmov %s1102
  %s1104 = vpop.sfrf %1103
  %p1105 = scmp.eq.s32.totalorder %s1104, 0
  %p1106 = pneg %p1105
  %1108 = shalt.err (%p1106)
  %s1109 = scalar_lea.sflag [#allocation3], 6
  %1110 = vsyncmov %s1109
  %s1111 = vpop.sfrf %1110
  %p1112 = scmp.eq.s32.totalorder %s1111, 0
  %p1113 = pneg %p1112
  %1115 = shalt.err (%p1113)
  %s1116 = scalar_lea.sflag [#allocation3], 7
  %1117 = vsyncmov %s1116
  %s1118 = vpop.sfrf %1117
  %p1119 = scmp.eq.s32.totalorder %s1118, 0
  %p1120 = pneg %p1119
  %1122 = shalt.err (%p1120)
  %s1123 = scalar_lea.sflag [#allocation3], 8
  %1124 = vsyncmov %s1123
  %s1125 = vpop.sfrf %1124
  %p1126 = scmp.eq.s32.totalorder %s1125, 0
  %p1127 = pneg %p1126
  %1129 = shalt.err (%p1127)
  %s1130 = scalar_lea.sflag [#allocation3], 9
  %1131 = vsyncmov %s1130
  %s1132 = vpop.sfrf %1131
  %p1133 = scmp.eq.s32.totalorder %s1132, 0
  %p1134 = pneg %p1133
  %1136 = shalt.err (%p1134)
  %s1137 = scalar_lea.sflag [#allocation3], 10
  %1138 = vsyncmov %s1137
  %s1139 = vpop.sfrf %1138
  %p1140 = scmp.eq.s32.totalorder %s1139, 0
  %p1141 = pneg %p1140
  %1143 = shalt.err (%p1141)
  %s1144 = scalar_lea.sflag [#allocation3], 11
  %1145 = vsyncmov %s1144
  %s1146 = vpop.sfrf %1145
  %p1147 = scmp.eq.s32.totalorder %s1146, 0
  %p1148 = pneg %p1147
  %1150 = shalt.err (%p1148)
  %s1151 = scalar_lea.sflag [#allocation3], 12
  %1152 = vsyncmov %s1151
  %s1153 = vpop.sfrf %1152
  %p1154 = scmp.eq.s32.totalorder %s1153, 0
  %p1155 = pneg %p1154
  %1157 = shalt.err (%p1155)
  %s1158 = scalar_lea.sflag [#allocation3], 13
  %1159 = vsyncmov %s1158
  %s1160 = vpop.sfrf %1159
  %p1161 = scmp.eq.s32.totalorder %s1160, 0
  %p1162 = pneg %p1161
  %1164 = shalt.err (%p1162)
  %s1165 = scalar_lea.sflag [#allocation3], 14
  %1166 = vsyncmov %s1165
  %s1167 = vpop.sfrf %1166
  %p1168 = scmp.eq.s32.totalorder %s1167, 0
  %p1169 = pneg %p1168
  %1171 = shalt.err (%p1169)
  %s1172 = scalar_lea.sflag [#allocation3], 15
  %1173 = vsyncmov %s1172
  %s1174 = vpop.sfrf %1173
  %p1175 = scmp.eq.s32.totalorder %s1174, 0
  %p1176 = pneg %p1175
  %1178 = shalt.err (%p1176)

</llo_original>
